<compile_context>
chip_gen: v5e
topology: v5e:2x2
jax: 0.10.0
libtpu: 0.0.40
codegen_flags: <defaults>
</compile_context>

<pallas_src>
import jax
import jax.numpy as jnp
from jax import lax
from jax.experimental import pallas as pl
from jax.experimental.pallas import tpu as pltpu

# ---------------- configuration (matches Bottle2neck(__init__) shapes) -------
IN_CH = 32          # in_channels
OUT_CH = 32         # out_channels (== in_channels so the residual add is valid)
KSIZE = 3           # kernel_size
DILATION = 2        # dilation
SCALE = 8           # scale
WIDTH = OUT_CH // SCALE
NUMS = SCALE - 1
REDUCTION = 8       # SEBlock reduction
SE_HID = OUT_CH // REDUCTION
B = 2               # batch
T = 16              # sequence length
BT = B * T
BN_EPS = 1e-5
PAD = DILATION * (KSIZE - 1) // 2      # = DILATION for KSIZE=3
KW = KSIZE * WIDTH                     # 12

# -------- packed-parameter slab layouts (row offsets, static) ----------------
# Slab A: 32 lanes (OUT_CH columns)
A_W1 = 0                               # conv1 weight, BN1 folded        (32 rows)
A_W3L = A_W1 + IN_CH                   # conv3 pass-through, embedded    (32 rows)
A_W3G = A_W3L + OUT_CH                 # conv3 per-group rows            (28 rows)
A_SE1 = A_W3G + NUMS * WIDTH           # SE fc1, zero-padded to 32 lanes (32 rows)
A_SE2 = A_SE1 + OUT_CH                 # SE fc2, zero-padded rows        (32 rows)
A_T1 = A_SE2 + OUT_CH                  # conv1 bias+BN shift             (1 row)
A_T3 = A_T1 + 1                        # conv3 bias+BN shift             (1 row)
A_ROWS = A_T3 + 1                      # 158
# Slab B: 12 lanes (K*WIDTH columns)
B_WC = 0                               # fused depth-conv weights        (28 rows)
B_TC = B_WC + NUMS * WIDTH             # depth-conv bias+BN shifts       (7 rows)
B_ROWS = B_TC + NUMS                   # 35


# ----------------------------- Pallas kernel ---------------------------------
def bottle2neck_kernel(x_ref, wa_ref, wb_ref, o_ref):
    x3 = x_ref[...]                                   # (B, T, Cin), time on sublanes
    x2 = x3.reshape(BT, IN_CH)

    # conv1 (1x1, BN1 + bias folded) + ReLU
    out = jnp.dot(x2, wa_ref[A_W1:A_W1 + IN_CH, :],
                  preferred_element_type=jnp.float32) + wa_ref[A_T1:A_T1 + 1, :]
    out = jnp.maximum(out, 0.0)                       # (BT, 32)

    # Loop-invariant per-batch time-index masks for the two shifted taps.  They
    # zero both the sequence-edge rows AND the rows that the circular roll wraps
    # across the batch boundary (those coincide exactly).
    t_idx = lax.broadcasted_iota(jnp.int32, (B, T, WIDTH), 1).reshape(BT, WIDTH)
    mask_lo = t_idx >= PAD                            # backward-looking tap valid
    mask_hi = t_idx < T - PAD                         # forward-looking tap valid

    # conv3 pass-through chunk: out @ w3_last (zero rows outside the last WIDTH
    # chunk) -> no lane-slice extract of spx[NUMS]; plus folded bias/BN shift.
    out3 = jnp.dot(out, wa_ref[A_W3L:A_W3L + OUT_CH, :],
                   preferred_element_type=jnp.float32) + wa_ref[A_T3:A_T3 + 1, :]

    sp = None
    for i in range(NUMS):
        # slice this group's chunk in-loop (keeps live ranges short)
        spx_i = out[:, i * WIDTH:(i + 1) * WIDTH]
        sp = spx_i if i == 0 else sp + spx_i

        # fused K=3 dilated depth conv: one matmul against [W_k0 | W_k1 | W_k2],
        # then shift the k=0 / k=2 partial products in registers (XLU roll) and
        # mask the invalid rows — no VMEM pad scratch, no store->load round trip.
        m = jnp.dot(sp, wb_ref[B_WC + i * WIDTH:B_WC + (i + 1) * WIDTH, :],
                    preferred_element_type=jnp.float32)            # (BT, K*W)
        acc = (jnp.where(mask_lo, pltpu.roll(m[:, 0:WIDTH], PAD, axis=0), 0.0)
               + m[:, WIDTH:2 * WIDTH]
               + jnp.where(mask_hi,
                           pltpu.roll(m[:, 2 * WIDTH:3 * WIDTH], BT - PAD, axis=0),
                           0.0))
        tci = wb_ref[B_TC + i:B_TC + i + 1, :][:, 0:WIDTH]          # (1, W)
        sp = jnp.maximum(acc + tci, 0.0)

        # conv3 distributed over groups (dependent add chain; MRB-friendly on v7x)
        out3 = out3 + jnp.dot(
            sp, wa_ref[A_W3G + i * WIDTH:A_W3G + (i + 1) * WIDTH, :],
            preferred_element_type=jnp.float32)

    # SE block (weights zero-padded to 32 lanes in the slab; padding is exact)
    out3b = out3.reshape(B, T, OUT_CH)
    y = jnp.mean(out3b, axis=1)                       # (B, 32)
    y = jnp.maximum(jnp.dot(y, wa_ref[A_SE1:A_SE1 + OUT_CH, :],
                            preferred_element_type=jnp.float32), 0.0)
    y = jax.nn.sigmoid(jnp.dot(y, wa_ref[A_SE2:A_SE2 + OUT_CH, :],
                               preferred_element_type=jnp.float32))

    # channel scale + residual add + ReLU
    o_ref[...] = jnp.maximum(out3b * y[:, None, :] + x3, 0.0)


# ----------------------------- wrapper ---------------------------------------
def bottle2neck_forward(x_btc, slab_a, slab_b):
    def full_spec(shape):
        n = len(shape)
        return pl.BlockSpec(shape, lambda i, _n=n: (0,) * _n)

    flops = (2 * BT * IN_CH * OUT_CH                 # conv1
             + 2 * BT * OUT_CH * OUT_CH              # conv3 pass-through (embedded)
             + 2 * BT * NUMS * WIDTH * KW            # fused depth convs
             + 2 * BT * NUMS * WIDTH * OUT_CH        # distributed conv3
             + 4 * B * OUT_CH * OUT_CH               # SE FCs (padded to 32 lanes)
             + 12 * BT * OUT_CH)                     # elementwise
    bytes_accessed = 4 * (BT * IN_CH + BT * OUT_CH
                          + int(slab_a.size) + int(slab_b.size))

    # NOTE: single grid step is right at this toy size; for real ECAPA shapes
    # (T in the hundreds, C=512) add a "parallel" grid axis over B*T row tiles.
    return pl.pallas_call(
        bottle2neck_kernel,
        out_shape=jax.ShapeDtypeStruct((B, T, OUT_CH), jnp.float32),
        grid=(1,),
        in_specs=[full_spec((B, T, IN_CH)),
                  full_spec((A_ROWS, OUT_CH)),
                  full_spec((B_ROWS, KW))],
        out_specs=full_spec((B, T, OUT_CH)),
        compiler_params=pltpu.CompilerParams(dimension_semantics=("arbitrary",)),
        cost_estimate=pl.CostEstimate(flops=flops,
                                      transcendentals=B * OUT_CH,
                                      bytes_accessed=bytes_accessed),
    )(x_btc, slab_a, slab_b)


# ------------------------- parameter construction ----------------------------
def make_params(key):
    """Raw (PyTorch-equivalent, eval-mode) parameters for the reference."""
    keys = iter(jax.random.split(key, 64))

    def rnd(shape, scale=0.2):
        return (jax.random.uniform(next(keys), shape, dtype=jnp.float32) - 0.5) * scale

    def bn_fold(c):
        gamma = 1.0 + rnd((c,), 0.1)
        beta = rnd((c,), 0.1)
        mean = rnd((c,), 0.1)
        var = 1.0 + jax.random.uniform(next(keys), (c,), dtype=jnp.float32) * 0.5
        s = gamma / jnp.sqrt(var + BN_EPS)
        t = beta - mean * s
        return s, t

    # conv1: torch weight (out,in,1) -> matmul weight (in,out)
    w1_t = rnd((OUT_CH, IN_CH, 1))
    w1 = jnp.transpose(w1_t[:, :, 0], (1, 0))
    b1 = rnd((OUT_CH,))
    s1, t1 = bn_fold(OUT_CH)

    # depth convs: torch weights (width,width,K) -> (NUMS, K, in_width, out_width)
    wcs, bcs, scs, tcs = [], [], [], []
    for _ in range(NUMS):
        w_t = rnd((WIDTH, WIDTH, KSIZE))                     # (out, in, k)
        wcs.append(jnp.stack([w_t[:, :, k].T for k in range(KSIZE)], axis=0))
        bcs.append(rnd((WIDTH,)))
        s, t = bn_fold(WIDTH)
        scs.append(s)
        tcs.append(t)
    wcs = jnp.stack(wcs, axis=0)                             # (NUMS, K, width, width)
    bcs = jnp.stack(bcs, axis=0)                             # (NUMS, width)
    scs = jnp.stack(scs, axis=0)
    tcs = jnp.stack(tcs, axis=0)

    # conv3
    w3_t = rnd((OUT_CH, OUT_CH, 1))
    w3 = jnp.transpose(w3_t[:, :, 0], (1, 0))
    b3 = rnd((OUT_CH,))
    s3, t3 = bn_fold(OUT_CH)

    # SE block (Linear weights (out,in), no bias) -> transposed for right-matmul
    wse1 = rnd((SE_HID, OUT_CH)).T                           # (C, C//r)
    wse2 = rnd((OUT_CH, SE_HID)).T                           # (C//r, C)

    return (w1, b1, s1, t1, wcs, bcs, scs, tcs, w3, b3, s3, t3, wse1, wse2)


def fold_params(raw):
    """Fold eval-mode BN + conv biases into the weights and pack two f32 slabs."""
    (w1, b1, s1, t1, wcs, bcs, scs, tcs, w3, b3, s3, t3, wse1, wse2) = raw
    # conv1 + BN1
    w1f = w1 * s1[None, :]
    t1f = (b1 * s1 + t1).reshape(1, OUT_CH)
    # depth convs + BNs: scale output channels, pack the K taps along the matmul
    # OUTPUT dim: wcat_i = [W_k0 | W_k1 | W_k2] -> (WIDTH, K*WIDTH)
    wcsf = wcs * scs[:, None, None, :]                       # (NUMS, K, Win, Wout)
    wcat = jnp.transpose(wcsf, (0, 2, 1, 3)).reshape(NUMS * WIDTH, KW)
    tcsf = bcs * scs + tcs                                   # (NUMS, WIDTH)
    tcs_rows = jnp.pad(tcsf, ((0, 0), (0, KW - WIDTH)))      # (NUMS, KW)
    # conv3 + BN3
    w3f = w3 * s3[None, :]
    t3f = (b3 * s3 + t3).reshape(1, OUT_CH)
    w3g = w3f[:NUMS * WIDTH, :]                              # per-group input rows
    w3_last = jnp.zeros_like(w3f).at[NUMS * WIDTH:, :].set(w3f[NUMS * WIDTH:, :])
    # SE weights zero-padded to 32 lanes (padding contributes exactly zero)
    wse1_pad = jnp.zeros((OUT_CH, OUT_CH), jnp.float32).at[:, :SE_HID].set(wse1)
    wse2_pad = jnp.zeros((OUT_CH, OUT_CH), jnp.float32).at[:SE_HID, :].set(wse2)

    slab_a = jnp.concatenate([w1f, w3_last, w3g, wse1_pad, wse2_pad, t1f, t3f],
                             axis=0)
    slab_b = jnp.concatenate([wcat, tcs_rows], axis=0)
    assert slab_a.shape == (A_ROWS, OUT_CH)
    assert slab_b.shape == (B_ROWS, KW)
    return slab_a, slab_b


# --------------------------- pure-JAX reference -------------------------------
def reference_forward(x, p):
    (w1, b1, s1, t1, wcs, bcs, scs, tcs, w3, b3, s3, t3, wse1, wse2) = p
    out = x @ w1 + b1
    out = out * s1 + t1
    out = jnp.maximum(out, 0.0)
    chunks = []
    sp = None
    for i in range(NUMS):
        spx_i = out[..., i * WIDTH:(i + 1) * WIDTH]
        sp = spx_i if i == 0 else sp + spx_i
        sp_pad = jnp.pad(sp, ((0, 0), (PAD, PAD), (0, 0)))
        acc = sum(sp_pad[:, k * DILATION:k * DILATION + T, :] @ wcs[i, k]
                  for k in range(KSIZE))
        acc = acc + bcs[i]
        acc = acc * scs[i] + tcs[i]
        sp = jnp.maximum(acc, 0.0)
        chunks.append(sp)
    chunks.append(out[..., NUMS * WIDTH:])
    cat = jnp.concatenate(chunks, axis=-1)
    out3 = cat @ w3 + b3
    out3 = out3 * s3 + t3
    y = jnp.mean(out3, axis=1, keepdims=True)
    y = jnp.maximum(y @ wse1, 0.0)
    y = jax.nn.sigmoid(y @ wse2)
    out3 = out3 * y
    return jnp.maximum(out3 + x, 0.0)


# ----------------------------------- main -------------------------------------
if __name__ == "__main__":
    key = jax.random.PRNGKey(0)
    kx, kp = jax.random.split(key)

    # Input in PyTorch layout (B, C, T), moved to the kernel's (B, T, C).
    x_bct = jax.random.normal(kx, (B, IN_CH, T), dtype=jnp.float32)
    x_btc = jnp.transpose(x_bct, (0, 2, 1))

    raw_params = make_params(kp)
    slab_a, slab_b = fold_params(raw_params)

    out_btc = bottle2neck_forward(x_btc, slab_a, slab_b)
    out_btc = jax.block_until_ready(out_btc)

    ref_btc = reference_forward(x_btc, raw_params)
    assert out_btc.shape == (B, T, OUT_CH)
    assert jnp.allclose(out_btc, ref_btc, atol=2e-4, rtol=2e-4), "mismatch vs reference"

    # back to PyTorch layout (B, C, T) if desired
    _out_bct = jnp.transpose(out_btc, (0, 2, 1))

    print("KERNEL_OK")
</pallas_src>

<mosaic_0001>
module attributes {stable_mosaic.version = 11 : i64} {
  func.func @bottle2neck_kernel(%arg0: i32, %arg1: memref<2x16x32xf32, #tpu.memory_space<vmem>>, %arg2: memref<158x32xf32, #tpu.memory_space<vmem>>, %arg3: memref<35x12xf32, #tpu.memory_space<vmem>>, %arg4: memref<2x16x32xf32, #tpu.memory_space<vmem>>) attributes {dimension_semantics = [#tpu.dimension_semantics<arbitrary>], iteration_bounds = array<i64: 1>, scalar_prefetch = 0 : i64, scratch_operands = 0 : i64, tpu.core_type = #tpu.core_type<tc>, window_params = [{pipeline_mode = #tpu.pipeline_mode<synchronous>, transform_indices = @transform_0, window_bounds = array<i64: 2, 16, 32>}, {pipeline_mode = #tpu.pipeline_mode<synchronous>, transform_indices = @transform_1, window_bounds = array<i64: 158, 32>}, {pipeline_mode = #tpu.pipeline_mode<synchronous>, transform_indices = @transform_2, window_bounds = array<i64: 35, 12>}, {pipeline_mode = #tpu.pipeline_mode<synchronous>, transform_indices = @transform_3, window_bounds = array<i64: 2, 16, 32>}]} {
    %c0 = arith.constant 0 : index
    %c0_0 = arith.constant 0 : index
    %c0_1 = arith.constant 0 : index
    %0 = vector.load %arg1[%c0, %c0_0, %c0_1] : memref<2x16x32xf32, #tpu.memory_space<vmem>>, vector<2x16x32xf32>
    %1 = vector.shape_cast %0 : vector<2x16x32xf32> to vector<32x32xf32>
    %c0_2 = arith.constant 0 : index
    %c0_3 = arith.constant 0 : index
    %2 = vector.load %arg2[%c0_2, %c0_3] : memref<158x32xf32, #tpu.memory_space<vmem>>, vector<32x32xf32>
    %cst = arith.constant dense<0.000000e+00> : vector<32x32xf32>
    %3 = tpu.matmul %1, %2, %cst {dimension_numbers = #tpu.dot_dimension_numbers<[1], [0], [0], [1], [0, 0, 1, 1], [], []>} : vector<32x32xf32>, vector<32x32xf32>, vector<32x32xf32> -> vector<32x32xf32>
    %c156 = arith.constant 156 : index
    %c0_4 = arith.constant 0 : index
    %4 = vector.load %arg2[%c156, %c0_4] : memref<158x32xf32, #tpu.memory_space<vmem>>, vector<1x32xf32>
    %5 = vector.broadcast %4 : vector<1x32xf32> to vector<32x32xf32>
    %6 = arith.addf %3, %5 : vector<32x32xf32>
    %cst_5 = arith.constant 0.000000e+00 : f32
    %7 = vector.broadcast %cst_5 : f32 to vector<32x32xf32>
    %8 = arith.maximumf %6, %7 : vector<32x32xf32>
    %9 = tpu.iota {dimensions = array<i32: 1>} : vector<2x16x4xi32>
    %10 = vector.shape_cast %9 : vector<2x16x4xi32> to vector<32x4xi32>
    %c2_i32 = arith.constant 2 : i32
    %11 = vector.broadcast %c2_i32 : i32 to vector<32x4xi32>
    %12 = arith.cmpi sge, %10, %11 : vector<32x4xi32>
    %c14_i32 = arith.constant 14 : i32
    %13 = vector.broadcast %c14_i32 : i32 to vector<32x4xi32>
    %14 = arith.cmpi slt, %10, %13 : vector<32x4xi32>
    %c32 = arith.constant 32 : index
    %c0_6 = arith.constant 0 : index
    %15 = vector.load %arg2[%c32, %c0_6] : memref<158x32xf32, #tpu.memory_space<vmem>>, vector<32x32xf32>
    %cst_7 = arith.constant dense<0.000000e+00> : vector<32x32xf32>
    %16 = tpu.matmul %8, %15, %cst_7 {dimension_numbers = #tpu.dot_dimension_numbers<[1], [0], [0], [1], [0, 0, 1, 1], [], []>} : vector<32x32xf32>, vector<32x32xf32>, vector<32x32xf32> -> vector<32x32xf32>
    %c157 = arith.constant 157 : index
    %c0_8 = arith.constant 0 : index
    %17 = vector.load %arg2[%c157, %c0_8] : memref<158x32xf32, #tpu.memory_space<vmem>>, vector<1x32xf32>
    %18 = vector.broadcast %17 : vector<1x32xf32> to vector<32x32xf32>
    %19 = arith.addf %16, %18 : vector<32x32xf32>
    %20 = vector.extract_strided_slice %8 {offsets = [0, 0], sizes = [32, 4], strides = [1, 1]} : vector<32x32xf32> to vector<32x4xf32>
    %c0_9 = arith.constant 0 : index
    %c0_10 = arith.constant 0 : index
    %21 = vector.load %arg3[%c0_9, %c0_10] : memref<35x12xf32, #tpu.memory_space<vmem>>, vector<4x12xf32>
    %cst_11 = arith.constant dense<0.000000e+00> : vector<32x12xf32>
    %22 = tpu.matmul %20, %21, %cst_11 {dimension_numbers = #tpu.dot_dimension_numbers<[1], [0], [0], [1], [0, 0, 1, 1], [], []>} : vector<32x4xf32>, vector<4x12xf32>, vector<32x12xf32> -> vector<32x12xf32>
    %23 = vector.extract_strided_slice %22 {offsets = [0, 0], sizes = [32, 4], strides = [1, 1]} : vector<32x12xf32> to vector<32x4xf32>
    %c2_i32_12 = arith.constant 2 : i32
    %24 = tpu.dynamic_rotate %23 by %c2_i32_12 dim 0 : vector<32x4xf32>, i32 -> vector<32x4xf32>
    %cst_13 = arith.constant 0.000000e+00 : f32
    %25 = vector.broadcast %cst_13 : f32 to vector<32x4xf32>
    %26 = arith.select %12, %24, %25 : vector<32x4xi1>, vector<32x4xf32>
    %27 = vector.extract_strided_slice %22 {offsets = [0, 4], sizes = [32, 4], strides = [1, 1]} : vector<32x12xf32> to vector<32x4xf32>
    %28 = arith.addf %26, %27 : vector<32x4xf32>
    %29 = vector.extract_strided_slice %22 {offsets = [0, 8], sizes = [32, 4], strides = [1, 1]} : vector<32x12xf32> to vector<32x4xf32>
    %c30_i32 = arith.constant 30 : i32
    %30 = tpu.dynamic_rotate %29 by %c30_i32 dim 0 : vector<32x4xf32>, i32 -> vector<32x4xf32>
    %cst_14 = arith.constant 0.000000e+00 : f32
    %31 = vector.broadcast %cst_14 : f32 to vector<32x4xf32>
    %32 = arith.select %14, %30, %31 : vector<32x4xi1>, vector<32x4xf32>
    %33 = arith.addf %28, %32 : vector<32x4xf32>
    %c28 = arith.constant 28 : index
    %c0_15 = arith.constant 0 : index
    %34 = vector.load %arg3[%c28, %c0_15] : memref<35x12xf32, #tpu.memory_space<vmem>>, vector<1x12xf32>
    %35 = vector.extract_strided_slice %34 {offsets = [0, 0], sizes = [1, 4], strides = [1, 1]} : vector<1x12xf32> to vector<1x4xf32>
    %36 = vector.broadcast %35 : vector<1x4xf32> to vector<32x4xf32>
    %37 = arith.addf %33, %36 : vector<32x4xf32>
    %cst_16 = arith.constant 0.000000e+00 : f32
    %38 = vector.broadcast %cst_16 : f32 to vector<32x4xf32>
    %39 = arith.maximumf %37, %38 : vector<32x4xf32>
    %c64 = arith.constant 64 : index
    %c0_17 = arith.constant 0 : index
    %40 = vector.load %arg2[%c64, %c0_17] : memref<158x32xf32, #tpu.memory_space<vmem>>, vector<4x32xf32>
    %cst_18 = arith.constant dense<0.000000e+00> : vector<32x32xf32>
    %41 = tpu.matmul %39, %40, %cst_18 {dimension_numbers = #tpu.dot_dimension_numbers<[1], [0], [0], [1], [0, 0, 1, 1], [], []>} : vector<32x4xf32>, vector<4x32xf32>, vector<32x32xf32> -> vector<32x32xf32>
    %42 = arith.addf %19, %41 : vector<32x32xf32>
    %43 = vector.extract_strided_slice %8 {offsets = [0, 4], sizes = [32, 4], strides = [1, 1]} : vector<32x32xf32> to vector<32x4xf32>
    %44 = arith.addf %39, %43 : vector<32x4xf32>
    %c4 = arith.constant 4 : index
    %c0_19 = arith.constant 0 : index
    %45 = vector.load %arg3[%c4, %c0_19] : memref<35x12xf32, #tpu.memory_space<vmem>>, vector<4x12xf32>
    %cst_20 = arith.constant dense<0.000000e+00> : vector<32x12xf32>
    %46 = tpu.matmul %44, %45, %cst_20 {dimension_numbers = #tpu.dot_dimension_numbers<[1], [0], [0], [1], [0, 0, 1, 1], [], []>} : vector<32x4xf32>, vector<4x12xf32>, vector<32x12xf32> -> vector<32x12xf32>
    %47 = vector.extract_strided_slice %46 {offsets = [0, 0], sizes = [32, 4], strides = [1, 1]} : vector<32x12xf32> to vector<32x4xf32>
    %c2_i32_21 = arith.constant 2 : i32
    %48 = tpu.dynamic_rotate %47 by %c2_i32_21 dim 0 : vector<32x4xf32>, i32 -> vector<32x4xf32>
    %cst_22 = arith.constant 0.000000e+00 : f32
    %49 = vector.broadcast %cst_22 : f32 to vector<32x4xf32>
    %50 = arith.select %12, %48, %49 : vector<32x4xi1>, vector<32x4xf32>
    %51 = vector.extract_strided_slice %46 {offsets = [0, 4], sizes = [32, 4], strides = [1, 1]} : vector<32x12xf32> to vector<32x4xf32>
    %52 = arith.addf %50, %51 : vector<32x4xf32>
    %53 = vector.extract_strided_slice %46 {offsets = [0, 8], sizes = [32, 4], strides = [1, 1]} : vector<32x12xf32> to vector<32x4xf32>
    %c30_i32_23 = arith.constant 30 : i32
    %54 = tpu.dynamic_rotate %53 by %c30_i32_23 dim 0 : vector<32x4xf32>, i32 -> vector<32x4xf32>
    %cst_24 = arith.constant 0.000000e+00 : f32
    %55 = vector.broadcast %cst_24 : f32 to vector<32x4xf32>
    %56 = arith.select %14, %54, %55 : vector<32x4xi1>, vector<32x4xf32>
    %57 = arith.addf %52, %56 : vector<32x4xf32>
    %c29 = arith.constant 29 : index
    %c0_25 = arith.constant 0 : index
    %58 = vector.load %arg3[%c29, %c0_25] : memref<35x12xf32, #tpu.memory_space<vmem>>, vector<1x12xf32>
    %59 = vector.extract_strided_slice %58 {offsets = [0, 0], sizes = [1, 4], strides = [1, 1]} : vector<1x12xf32> to vector<1x4xf32>
    %60 = vector.broadcast %59 : vector<1x4xf32> to vector<32x4xf32>
    %61 = arith.addf %57, %60 : vector<32x4xf32>
    %cst_26 = arith.constant 0.000000e+00 : f32
    %62 = vector.broadcast %cst_26 : f32 to vector<32x4xf32>
    %63 = arith.maximumf %61, %62 : vector<32x4xf32>
    %c68 = arith.constant 68 : index
    %c0_27 = arith.constant 0 : index
    %64 = vector.load %arg2[%c68, %c0_27] : memref<158x32xf32, #tpu.memory_space<vmem>>, vector<4x32xf32>
    %cst_28 = arith.constant dense<0.000000e+00> : vector<32x32xf32>
    %65 = tpu.matmul %63, %64, %cst_28 {dimension_numbers = #tpu.dot_dimension_numbers<[1], [0], [0], [1], [0, 0, 1, 1], [], []>} : vector<32x4xf32>, vector<4x32xf32>, vector<32x32xf32> -> vector<32x32xf32>
    %66 = arith.addf %42, %65 : vector<32x32xf32>
    %67 = vector.extract_strided_slice %8 {offsets = [0, 8], sizes = [32, 4], strides = [1, 1]} : vector<32x32xf32> to vector<32x4xf32>
    %68 = arith.addf %63, %67 : vector<32x4xf32>
    %c8 = arith.constant 8 : index
    %c0_29 = arith.constant 0 : index
    %69 = vector.load %arg3[%c8, %c0_29] : memref<35x12xf32, #tpu.memory_space<vmem>>, vector<4x12xf32>
    %cst_30 = arith.constant dense<0.000000e+00> : vector<32x12xf32>
    %70 = tpu.matmul %68, %69, %cst_30 {dimension_numbers = #tpu.dot_dimension_numbers<[1], [0], [0], [1], [0, 0, 1, 1], [], []>} : vector<32x4xf32>, vector<4x12xf32>, vector<32x12xf32> -> vector<32x12xf32>
    %71 = vector.extract_strided_slice %70 {offsets = [0, 0], sizes = [32, 4], strides = [1, 1]} : vector<32x12xf32> to vector<32x4xf32>
    %c2_i32_31 = arith.constant 2 : i32
    %72 = tpu.dynamic_rotate %71 by %c2_i32_31 dim 0 : vector<32x4xf32>, i32 -> vector<32x4xf32>
    %cst_32 = arith.constant 0.000000e+00 : f32
    %73 = vector.broadcast %cst_32 : f32 to vector<32x4xf32>
    %74 = arith.select %12, %72, %73 : vector<32x4xi1>, vector<32x4xf32>
    %75 = vector.extract_strided_slice %70 {offsets = [0, 4], sizes = [32, 4], strides = [1, 1]} : vector<32x12xf32> to vector<32x4xf32>
    %76 = arith.addf %74, %75 : vector<32x4xf32>
    %77 = vector.extract_strided_slice %70 {offsets = [0, 8], sizes = [32, 4], strides = [1, 1]} : vector<32x12xf32> to vector<32x4xf32>
    %c30_i32_33 = arith.constant 30 : i32
    %78 = tpu.dynamic_rotate %77 by %c30_i32_33 dim 0 : vector<32x4xf32>, i32 -> vector<32x4xf32>
    %cst_34 = arith.constant 0.000000e+00 : f32
    %79 = vector.broadcast %cst_34 : f32 to vector<32x4xf32>
    %80 = arith.select %14, %78, %79 : vector<32x4xi1>, vector<32x4xf32>
    %81 = arith.addf %76, %80 : vector<32x4xf32>
    %c30 = arith.constant 30 : index
    %c0_35 = arith.constant 0 : index
    %82 = vector.load %arg3[%c30, %c0_35] : memref<35x12xf32, #tpu.memory_space<vmem>>, vector<1x12xf32>
    %83 = vector.extract_strided_slice %82 {offsets = [0, 0], sizes = [1, 4], strides = [1, 1]} : vector<1x12xf32> to vector<1x4xf32>
    %84 = vector.broadcast %83 : vector<1x4xf32> to vector<32x4xf32>
    %85 = arith.addf %81, %84 : vector<32x4xf32>
    %cst_36 = arith.constant 0.000000e+00 : f32
    %86 = vector.broadcast %cst_36 : f32 to vector<32x4xf32>
    %87 = arith.maximumf %85, %86 : vector<32x4xf32>
    %c72 = arith.constant 72 : index
    %c0_37 = arith.constant 0 : index
    %88 = vector.load %arg2[%c72, %c0_37] : memref<158x32xf32, #tpu.memory_space<vmem>>, vector<4x32xf32>
    %cst_38 = arith.constant dense<0.000000e+00> : vector<32x32xf32>
    %89 = tpu.matmul %87, %88, %cst_38 {dimension_numbers = #tpu.dot_dimension_numbers<[1], [0], [0], [1], [0, 0, 1, 1], [], []>} : vector<32x4xf32>, vector<4x32xf32>, vector<32x32xf32> -> vector<32x32xf32>
    %90 = arith.addf %66, %89 : vector<32x32xf32>
    %91 = vector.extract_strided_slice %8 {offsets = [0, 12], sizes = [32, 4], strides = [1, 1]} : vector<32x32xf32> to vector<32x4xf32>
    %92 = arith.addf %87, %91 : vector<32x4xf32>
    %c12 = arith.constant 12 : index
    %c0_39 = arith.constant 0 : index
    %93 = vector.load %arg3[%c12, %c0_39] : memref<35x12xf32, #tpu.memory_space<vmem>>, vector<4x12xf32>
    %cst_40 = arith.constant dense<0.000000e+00> : vector<32x12xf32>
    %94 = tpu.matmul %92, %93, %cst_40 {dimension_numbers = #tpu.dot_dimension_numbers<[1], [0], [0], [1], [0, 0, 1, 1], [], []>} : vector<32x4xf32>, vector<4x12xf32>, vector<32x12xf32> -> vector<32x12xf32>
    %95 = vector.extract_strided_slice %94 {offsets = [0, 0], sizes = [32, 4], strides = [1, 1]} : vector<32x12xf32> to vector<32x4xf32>
    %c2_i32_41 = arith.constant 2 : i32
    %96 = tpu.dynamic_rotate %95 by %c2_i32_41 dim 0 : vector<32x4xf32>, i32 -> vector<32x4xf32>
    %cst_42 = arith.constant 0.000000e+00 : f32
    %97 = vector.broadcast %cst_42 : f32 to vector<32x4xf32>
    %98 = arith.select %12, %96, %97 : vector<32x4xi1>, vector<32x4xf32>
    %99 = vector.extract_strided_slice %94 {offsets = [0, 4], sizes = [32, 4], strides = [1, 1]} : vector<32x12xf32> to vector<32x4xf32>
    %100 = arith.addf %98, %99 : vector<32x4xf32>
    %101 = vector.extract_strided_slice %94 {offsets = [0, 8], sizes = [32, 4], strides = [1, 1]} : vector<32x12xf32> to vector<32x4xf32>
    %c30_i32_43 = arith.constant 30 : i32
    %102 = tpu.dynamic_rotate %101 by %c30_i32_43 dim 0 : vector<32x4xf32>, i32 -> vector<32x4xf32>
    %cst_44 = arith.constant 0.000000e+00 : f32
    %103 = vector.broadcast %cst_44 : f32 to vector<32x4xf32>
    %104 = arith.select %14, %102, %103 : vector<32x4xi1>, vector<32x4xf32>
    %105 = arith.addf %100, %104 : vector<32x4xf32>
    %c31 = arith.constant 31 : index
    %c0_45 = arith.constant 0 : index
    %106 = vector.load %arg3[%c31, %c0_45] : memref<35x12xf32, #tpu.memory_space<vmem>>, vector<1x12xf32>
    %107 = vector.extract_strided_slice %106 {offsets = [0, 0], sizes = [1, 4], strides = [1, 1]} : vector<1x12xf32> to vector<1x4xf32>
    %108 = vector.broadcast %107 : vector<1x4xf32> to vector<32x4xf32>
    %109 = arith.addf %105, %108 : vector<32x4xf32>
    %cst_46 = arith.constant 0.000000e+00 : f32
    %110 = vector.broadcast %cst_46 : f32 to vector<32x4xf32>
    %111 = arith.maximumf %109, %110 : vector<32x4xf32>
    %c76 = arith.constant 76 : index
    %c0_47 = arith.constant 0 : index
    %112 = vector.load %arg2[%c76, %c0_47] : memref<158x32xf32, #tpu.memory_space<vmem>>, vector<4x32xf32>
    %cst_48 = arith.constant dense<0.000000e+00> : vector<32x32xf32>
    %113 = tpu.matmul %111, %112, %cst_48 {dimension_numbers = #tpu.dot_dimension_numbers<[1], [0], [0], [1], [0, 0, 1, 1], [], []>} : vector<32x4xf32>, vector<4x32xf32>, vector<32x32xf32> -> vector<32x32xf32>
    %114 = arith.addf %90, %113 : vector<32x32xf32>
    %115 = vector.extract_strided_slice %8 {offsets = [0, 16], sizes = [32, 4], strides = [1, 1]} : vector<32x32xf32> to vector<32x4xf32>
    %116 = arith.addf %111, %115 : vector<32x4xf32>
    %c16 = arith.constant 16 : index
    %c0_49 = arith.constant 0 : index
    %117 = vector.load %arg3[%c16, %c0_49] : memref<35x12xf32, #tpu.memory_space<vmem>>, vector<4x12xf32>
    %cst_50 = arith.constant dense<0.000000e+00> : vector<32x12xf32>
    %118 = tpu.matmul %116, %117, %cst_50 {dimension_numbers = #tpu.dot_dimension_numbers<[1], [0], [0], [1], [0, 0, 1, 1], [], []>} : vector<32x4xf32>, vector<4x12xf32>, vector<32x12xf32> -> vector<32x12xf32>
    %119 = vector.extract_strided_slice %118 {offsets = [0, 0], sizes = [32, 4], strides = [1, 1]} : vector<32x12xf32> to vector<32x4xf32>
    %c2_i32_51 = arith.constant 2 : i32
    %120 = tpu.dynamic_rotate %119 by %c2_i32_51 dim 0 : vector<32x4xf32>, i32 -> vector<32x4xf32>
    %cst_52 = arith.constant 0.000000e+00 : f32
    %121 = vector.broadcast %cst_52 : f32 to vector<32x4xf32>
    %122 = arith.select %12, %120, %121 : vector<32x4xi1>, vector<32x4xf32>
    %123 = vector.extract_strided_slice %118 {offsets = [0, 4], sizes = [32, 4], strides = [1, 1]} : vector<32x12xf32> to vector<32x4xf32>
    %124 = arith.addf %122, %123 : vector<32x4xf32>
    %125 = vector.extract_strided_slice %118 {offsets = [0, 8], sizes = [32, 4], strides = [1, 1]} : vector<32x12xf32> to vector<32x4xf32>
    %c30_i32_53 = arith.constant 30 : i32
    %126 = tpu.dynamic_rotate %125 by %c30_i32_53 dim 0 : vector<32x4xf32>, i32 -> vector<32x4xf32>
    %cst_54 = arith.constant 0.000000e+00 : f32
    %127 = vector.broadcast %cst_54 : f32 to vector<32x4xf32>
    %128 = arith.select %14, %126, %127 : vector<32x4xi1>, vector<32x4xf32>
    %129 = arith.addf %124, %128 : vector<32x4xf32>
    %c32_55 = arith.constant 32 : index
    %c0_56 = arith.constant 0 : index
    %130 = vector.load %arg3[%c32_55, %c0_56] : memref<35x12xf32, #tpu.memory_space<vmem>>, vector<1x12xf32>
    %131 = vector.extract_strided_slice %130 {offsets = [0, 0], sizes = [1, 4], strides = [1, 1]} : vector<1x12xf32> to vector<1x4xf32>
    %132 = vector.broadcast %131 : vector<1x4xf32> to vector<32x4xf32>
    %133 = arith.addf %129, %132 : vector<32x4xf32>
    %cst_57 = arith.constant 0.000000e+00 : f32
    %134 = vector.broadcast %cst_57 : f32 to vector<32x4xf32>
    %135 = arith.maximumf %133, %134 : vector<32x4xf32>
    %c80 = arith.constant 80 : index
    %c0_58 = arith.constant 0 : index
    %136 = vector.load %arg2[%c80, %c0_58] : memref<158x32xf32, #tpu.memory_space<vmem>>, vector<4x32xf32>
    %cst_59 = arith.constant dense<0.000000e+00> : vector<32x32xf32>
    %137 = tpu.matmul %135, %136, %cst_59 {dimension_numbers = #tpu.dot_dimension_numbers<[1], [0], [0], [1], [0, 0, 1, 1], [], []>} : vector<32x4xf32>, vector<4x32xf32>, vector<32x32xf32> -> vector<32x32xf32>
    %138 = arith.addf %114, %137 : vector<32x32xf32>
    %139 = vector.extract_strided_slice %8 {offsets = [0, 20], sizes = [32, 4], strides = [1, 1]} : vector<32x32xf32> to vector<32x4xf32>
    %140 = arith.addf %135, %139 : vector<32x4xf32>
    %c20 = arith.constant 20 : index
    %c0_60 = arith.constant 0 : index
    %141 = vector.load %arg3[%c20, %c0_60] : memref<35x12xf32, #tpu.memory_space<vmem>>, vector<4x12xf32>
    %cst_61 = arith.constant dense<0.000000e+00> : vector<32x12xf32>
    %142 = tpu.matmul %140, %141, %cst_61 {dimension_numbers = #tpu.dot_dimension_numbers<[1], [0], [0], [1], [0, 0, 1, 1], [], []>} : vector<32x4xf32>, vector<4x12xf32>, vector<32x12xf32> -> vector<32x12xf32>
    %143 = vector.extract_strided_slice %142 {offsets = [0, 0], sizes = [32, 4], strides = [1, 1]} : vector<32x12xf32> to vector<32x4xf32>
    %c2_i32_62 = arith.constant 2 : i32
    %144 = tpu.dynamic_rotate %143 by %c2_i32_62 dim 0 : vector<32x4xf32>, i32 -> vector<32x4xf32>
    %cst_63 = arith.constant 0.000000e+00 : f32
    %145 = vector.broadcast %cst_63 : f32 to vector<32x4xf32>
    %146 = arith.select %12, %144, %145 : vector<32x4xi1>, vector<32x4xf32>
    %147 = vector.extract_strided_slice %142 {offsets = [0, 4], sizes = [32, 4], strides = [1, 1]} : vector<32x12xf32> to vector<32x4xf32>
    %148 = arith.addf %146, %147 : vector<32x4xf32>
    %149 = vector.extract_strided_slice %142 {offsets = [0, 8], sizes = [32, 4], strides = [1, 1]} : vector<32x12xf32> to vector<32x4xf32>
    %c30_i32_64 = arith.constant 30 : i32
    %150 = tpu.dynamic_rotate %149 by %c30_i32_64 dim 0 : vector<32x4xf32>, i32 -> vector<32x4xf32>
    %cst_65 = arith.constant 0.000000e+00 : f32
    %151 = vector.broadcast %cst_65 : f32 to vector<32x4xf32>
    %152 = arith.select %14, %150, %151 : vector<32x4xi1>, vector<32x4xf32>
    %153 = arith.addf %148, %152 : vector<32x4xf32>
    %c33 = arith.constant 33 : index
    %c0_66 = arith.constant 0 : index
    %154 = vector.load %arg3[%c33, %c0_66] : memref<35x12xf32, #tpu.memory_space<vmem>>, vector<1x12xf32>
    %155 = vector.extract_strided_slice %154 {offsets = [0, 0], sizes = [1, 4], strides = [1, 1]} : vector<1x12xf32> to vector<1x4xf32>
    %156 = vector.broadcast %155 : vector<1x4xf32> to vector<32x4xf32>
    %157 = arith.addf %153, %156 : vector<32x4xf32>
    %cst_67 = arith.constant 0.000000e+00 : f32
    %158 = vector.broadcast %cst_67 : f32 to vector<32x4xf32>
    %159 = arith.maximumf %157, %158 : vector<32x4xf32>
    %c84 = arith.constant 84 : index
    %c0_68 = arith.constant 0 : index
    %160 = vector.load %arg2[%c84, %c0_68] : memref<158x32xf32, #tpu.memory_space<vmem>>, vector<4x32xf32>
    %cst_69 = arith.constant dense<0.000000e+00> : vector<32x32xf32>
    %161 = tpu.matmul %159, %160, %cst_69 {dimension_numbers = #tpu.dot_dimension_numbers<[1], [0], [0], [1], [0, 0, 1, 1], [], []>} : vector<32x4xf32>, vector<4x32xf32>, vector<32x32xf32> -> vector<32x32xf32>
    %162 = arith.addf %138, %161 : vector<32x32xf32>
    %163 = vector.extract_strided_slice %8 {offsets = [0, 24], sizes = [32, 4], strides = [1, 1]} : vector<32x32xf32> to vector<32x4xf32>
    %164 = arith.addf %159, %163 : vector<32x4xf32>
    %c24 = arith.constant 24 : index
    %c0_70 = arith.constant 0 : index
    %165 = vector.load %arg3[%c24, %c0_70] : memref<35x12xf32, #tpu.memory_space<vmem>>, vector<4x12xf32>
    %cst_71 = arith.constant dense<0.000000e+00> : vector<32x12xf32>
    %166 = tpu.matmul %164, %165, %cst_71 {dimension_numbers = #tpu.dot_dimension_numbers<[1], [0], [0], [1], [0, 0, 1, 1], [], []>} : vector<32x4xf32>, vector<4x12xf32>, vector<32x12xf32> -> vector<32x12xf32>
    %167 = vector.extract_strided_slice %166 {offsets = [0, 0], sizes = [32, 4], strides = [1, 1]} : vector<32x12xf32> to vector<32x4xf32>
    %c2_i32_72 = arith.constant 2 : i32
    %168 = tpu.dynamic_rotate %167 by %c2_i32_72 dim 0 : vector<32x4xf32>, i32 -> vector<32x4xf32>
    %cst_73 = arith.constant 0.000000e+00 : f32
    %169 = vector.broadcast %cst_73 : f32 to vector<32x4xf32>
    %170 = arith.select %12, %168, %169 : vector<32x4xi1>, vector<32x4xf32>
    %171 = vector.extract_strided_slice %166 {offsets = [0, 4], sizes = [32, 4], strides = [1, 1]} : vector<32x12xf32> to vector<32x4xf32>
    %172 = arith.addf %170, %171 : vector<32x4xf32>
    %173 = vector.extract_strided_slice %166 {offsets = [0, 8], sizes = [32, 4], strides = [1, 1]} : vector<32x12xf32> to vector<32x4xf32>
    %c30_i32_74 = arith.constant 30 : i32
    %174 = tpu.dynamic_rotate %173 by %c30_i32_74 dim 0 : vector<32x4xf32>, i32 -> vector<32x4xf32>
    %cst_75 = arith.constant 0.000000e+00 : f32
    %175 = vector.broadcast %cst_75 : f32 to vector<32x4xf32>
    %176 = arith.select %14, %174, %175 : vector<32x4xi1>, vector<32x4xf32>
    %177 = arith.addf %172, %176 : vector<32x4xf32>
    %c34 = arith.constant 34 : index
    %c0_76 = arith.constant 0 : index
    %178 = vector.load %arg3[%c34, %c0_76] : memref<35x12xf32, #tpu.memory_space<vmem>>, vector<1x12xf32>
    %179 = vector.extract_strided_slice %178 {offsets = [0, 0], sizes = [1, 4], strides = [1, 1]} : vector<1x12xf32> to vector<1x4xf32>
    %180 = vector.broadcast %179 : vector<1x4xf32> to vector<32x4xf32>
    %181 = arith.addf %177, %180 : vector<32x4xf32>
    %cst_77 = arith.constant 0.000000e+00 : f32
    %182 = vector.broadcast %cst_77 : f32 to vector<32x4xf32>
    %183 = arith.maximumf %181, %182 : vector<32x4xf32>
    %c88 = arith.constant 88 : index
    %c0_78 = arith.constant 0 : index
    %184 = vector.load %arg2[%c88, %c0_78] : memref<158x32xf32, #tpu.memory_space<vmem>>, vector<4x32xf32>
    %cst_79 = arith.constant dense<0.000000e+00> : vector<32x32xf32>
    %185 = tpu.matmul %183, %184, %cst_79 {dimension_numbers = #tpu.dot_dimension_numbers<[1], [0], [0], [1], [0, 0, 1, 1], [], []>} : vector<32x4xf32>, vector<4x32xf32>, vector<32x32xf32> -> vector<32x32xf32>
    %186 = arith.addf %162, %185 : vector<32x32xf32>
    %187 = vector.shape_cast %186 : vector<32x32xf32> to vector<2x16x32xf32>
    %cst_80 = arith.constant dense<0.000000e+00> : vector<2x32xf32>
    %188 = vector.multi_reduction <add>, %187, %cst_80 [1] : vector<2x16x32xf32> to vector<2x32xf32>
    %cst_81 = arith.constant 1.600000e+01 : f32
    %189 = vector.broadcast %cst_81 : f32 to vector<2x32xf32>
    %190 = arith.divf %188, %189 : vector<2x32xf32>
    %c92 = arith.constant 92 : index
    %c0_82 = arith.constant 0 : index
    %191 = vector.load %arg2[%c92, %c0_82] : memref<158x32xf32, #tpu.memory_space<vmem>>, vector<32x32xf32>
    %cst_83 = arith.constant dense<0.000000e+00> : vector<2x32xf32>
    %192 = tpu.matmul %190, %191, %cst_83 {dimension_numbers = #tpu.dot_dimension_numbers<[1], [0], [0], [1], [0, 0, 1, 1], [], []>} : vector<2x32xf32>, vector<32x32xf32>, vector<2x32xf32> -> vector<2x32xf32>
    %cst_84 = arith.constant 0.000000e+00 : f32
    %193 = vector.broadcast %cst_84 : f32 to vector<2x32xf32>
    %194 = arith.maximumf %192, %193 : vector<2x32xf32>
    %c124 = arith.constant 124 : index
    %c0_85 = arith.constant 0 : index
    %195 = vector.load %arg2[%c124, %c0_85] : memref<158x32xf32, #tpu.memory_space<vmem>>, vector<32x32xf32>
    %cst_86 = arith.constant dense<0.000000e+00> : vector<2x32xf32>
    %196 = tpu.matmul %194, %195, %cst_86 {dimension_numbers = #tpu.dot_dimension_numbers<[1], [0], [0], [1], [0, 0, 1, 1], [], []>} : vector<2x32xf32>, vector<32x32xf32>, vector<2x32xf32> -> vector<2x32xf32>
    %197 = arith.negf %196 : vector<2x32xf32>
    %198 = math.exp %197 : vector<2x32xf32>
    %cst_87 = arith.constant 1.000000e+00 : f32
    %199 = vector.broadcast %cst_87 : f32 to vector<2x32xf32>
    %200 = arith.addf %199, %198 : vector<2x32xf32>
    %201 = arith.divf %199, %200 : vector<2x32xf32>
    %202 = vector.shape_cast %201 : vector<2x32xf32> to vector<2x1x32xf32>
    %203 = vector.broadcast %202 : vector<2x1x32xf32> to vector<2x16x32xf32>
    %204 = arith.mulf %187, %203 : vector<2x16x32xf32>
    %205 = arith.addf %204, %0 : vector<2x16x32xf32>
    %cst_88 = arith.constant 0.000000e+00 : f32
    %206 = vector.broadcast %cst_88 : f32 to vector<2x16x32xf32>
    %207 = arith.maximumf %205, %206 : vector<2x16x32xf32>
    %c0_89 = arith.constant 0 : index
    %c0_90 = arith.constant 0 : index
    %c0_91 = arith.constant 0 : index
    %208 = vector.load %arg4[%c0_89, %c0_90, %c0_91] : memref<2x16x32xf32, #tpu.memory_space<vmem>>, vector<2x16x32xf32>
    tpu.vector_store %arg4[%c0_89, %c0_90, %c0_91], %207 {strides = array<i32>} : memref<2x16x32xf32, #tpu.memory_space<vmem>>, vector<2x16x32xf32>,
    return
  }
  func.func @transform_0(%arg0: i32) -> (i32, i32, i32) {
    %c0_i32 = arith.constant 0 : i32
    %c0_i32_0 = arith.constant 0 : i32
    %c0_i32_1 = arith.constant 0 : i32
    %c0_i32_2 = arith.constant 0 : i32
    return %c0_i32, %c0_i32_0, %c0_i32_1 : i32, i32, i32
  }
  func.func @transform_1(%arg0: i32) -> (i32, i32) {
    %c0_i32 = arith.constant 0 : i32
    %c0_i32_0 = arith.constant 0 : i32
    %c0_i32_1 = arith.constant 0 : i32
    return %c0_i32, %c0_i32_0 : i32, i32
  }
  func.func @transform_2(%arg0: i32) -> (i32, i32) {
    %c0_i32 = arith.constant 0 : i32
    %c0_i32_0 = arith.constant 0 : i32
    %c0_i32_1 = arith.constant 0 : i32
    return %c0_i32, %c0_i32_0 : i32, i32
  }
  func.func @transform_3(%arg0: i32) -> (i32, i32, i32) {
    %c0_i32 = arith.constant 0 : i32
    %c0_i32_0 = arith.constant 0 : i32
    %c0_i32_1 = arith.constant 0 : i32
    %c0_i32_2 = arith.constant 0 : i32
    return %c0_i32, %c0_i32_0, %c0_i32_1 : i32, i32, i32
  }
}

</mosaic_0001>

<llo_original>
// kernel: tpu_custom_call.1
$region0: #{tpu_custom_call.1}
  #allocation0 [shape = 'u32[]', space=smem, size = 0x4, offset = 0x4, fixed_abs, tag = 'smem constant byte address 0x4 - core index']
  #allocation1 [shape = 'u32[72,128]{1,0:T(1,128)}', space=vmem, size = 0x9000, scoped, tag = 'internal scratch']
  %s0 = inlined_call_operand.vmem [shape: f32[2,16,32], index: 0, kind: input, shape index: {}]
  %s1 = inlined_call_operand.vmem [shape: f32[158,32], index: 1, kind: input, shape index: {}]
  %s2 = inlined_call_operand.vmem [shape: f32[35,12], index: 2, kind: input, shape index: {}]
  %s3 = inlined_call_operand.hbm [shape: f32[2,16,32], index: 3, kind: output, shape index: {}]
  %s4 = sld [smem:[#allocation0]]
  $region22: #{tpu_custom_call.1} parent=0
    _
  %s6 = ssub.s32 1, %s4
  %s7 = scalar_select 0, %s6, %s4
  $region1: #{tpu_custom_call.1} parent=0
    #allocation2 [shape = 'u8[16384]{0}', space=vmem, size = 0x4000, scoped, tag = 'output window, operand 0, single buffered']
    #allocation3 [shape = 's32[1]{0}', space=sflag, size = 0x4, scoped, tag = 'scoped memory for tpu_custom_call.1']
    %8 = vsyncpa [#allocation3], 0
    // Predicated region
    $region2: #{tpu_custom_call.1} parent=1 // pred_check
      _
    $region3: #{tpu_custom_call.1} parent=1 // pred_check_branch
      %10 = sbr.rel (0) target = $region5
    $region4: #{tpu_custom_call.1} parent=1 // pred_region
      _
    $region5: #{tpu_custom_call.1} parent=1 // pred_fallthru
      _
    // Predicated region
    $region6: #{tpu_custom_call.1} parent=1 // pred_check
      _
    $region7: #{tpu_custom_call.1} parent=1 // pred_check_branch
      %12 = sbr.rel (0) target = $region9
    $region8: #{tpu_custom_call.1} parent=1 // pred_region
      _
    $region9: #{tpu_custom_call.1} parent=1 // pred_fallthru
      _
    // Predicated region
    $region10: #{tpu_custom_call.1} parent=1 // pred_check
      _
    $region11: #{tpu_custom_call.1} parent=1 // pred_check_branch
      %14 = sbr.rel (0) target = $region13
    $region12: #{tpu_custom_call.1} parent=1 // pred_region
      _
    $region13: #{tpu_custom_call.1} parent=1 // pred_fallthru
      _
    %v15 = vld [vmem:[%s0] sm:$0xff]
    %v16 = vld [vmem:[%s0 + $0x8] sm:$0xff]
    %v17 = vld [vmem:[%s0 + $0x10] sm:$0xff]
    %v18 = vld [vmem:[%s0 + $0x18] sm:$0xff]
    %v19 = vld [vmem:[%s1] sm:$0xff]
    %v20 = vld [vmem:[%s1 + $0x8] sm:$0xff]
    %v21 = vld [vmem:[%s1 + $0x10] sm:$0xff]
    %v22 = vld [vmem:[%s1 + $0x18] sm:$0xff]
    %v23 = vld [vmem:[%s1 + $0x9c] sm:$0x1]
    %v24 = vperm.slane %v23, 0
    %vm25 = vcmask 261120
    %v27 = vsel %vm25, %v15, 0
    %v30 = vsel %vm25, %v16, 0
    %v33 = vsel %vm25, %v17, 0
    %v36 = vsel %vm25, %v18, 0
    %38 = vmatpush.msra.mxu0 0.0
    %39 = vmatpush.msra.mxu0 0.0
    %40 = vmatpush.msra.mxu0 0.0
    %41 = vmatpush.msra.mxu0 0.0
    %42 = vmatpush.msra.mxu0 0.0
    %43 = vmatpush.msra.mxu0 0.0
    %44 = vmatpush.msra.mxu0 0.0
    %45 = vmatpush.msra.mxu0 0.0
    %46 = vmatpush.msra.mxu0 0.0
    %47 = vmatpush.msra.mxu0 0.0
    %48 = vmatpush.msra.mxu0 0.0
    %49 = vmatpush.msra.mxu0 0.0
    %50 = vmatpush.msra.mxu0 %v22
    %51 = vmatpush.msra.mxu0 %v21
    %52 = vmatpush.msra.mxu0 %v20
    %53 = vmatpush.msra.mxu0 %v19
    %54 = vmatmul.f32.gmra.mxu0 %v27
    %v55 = vpop.f32.mrf.mxu0
    %v56 = vadd.f32 %v24, %v55
    %57 = vmatmul.f32.gmra.mxu0 %v30
    %v58 = vpop.f32.mrf.mxu0
    %v59 = vadd.f32 %v24, %v58
    %60 = vmatmul.f32.gmra.mxu0 %v33
    %v61 = vpop.f32.mrf.mxu0
    %v62 = vadd.f32 %v24, %v61
    %63 = vmatmul.f32.gmra.mxu0 %v36
    %v64 = vpop.f32.mrf.mxu0
    %v65 = vadd.f32 %v24, %v64
    %66 = vdwg.mxu0
    %v67 = vmax.f32 %v56, 0.0
    %v68 = vmax.f32 %v59, 0.0
    %v69 = vmax.f32 %v62, 0.0
    %v70 = vmax.f32 %v65, 0.0
    %v71 = vlaneseq
    %v72 = vshrl.u32 %v71, 7
    %v73 = vadd.s32 %v72, 8
    %vm74 = vcmp.ge.s32.totalorder %v72, 2
    %vm75 = vcmp.ge.s32.totalorder %v73, 2
    %vm76 = vcmp.lt.s32.totalorder %v72, 14
    %vm77 = vcmp.lt.s32.totalorder %v73, 14
    %v78 = vld [vmem:[%s1 + $0x20] sm:$0xff]
    %v79 = vld [vmem:[%s1 + $0x28] sm:$0xff]
    %v80 = vld [vmem:[%s1 + $0x30] sm:$0xff]
    %v81 = vld [vmem:[%s1 + $0x38] sm:$0xff]
    %v82 = vld [vmem:[%s1 + $0x9d] sm:$0x1]
    %v83 = vperm.slane %v82, 0
    %v85 = vsel %vm25, %v67, 0
    %v88 = vsel %vm25, %v68, 0
    %v91 = vsel %vm25, %v69, 0
    %v94 = vsel %vm25, %v70, 0
    %96 = vmatpush.msra.mxu0 0.0
    %97 = vmatpush.msra.mxu0 0.0
    %98 = vmatpush.msra.mxu0 0.0
    %99 = vmatpush.msra.mxu0 0.0
    %100 = vmatpush.msra.mxu0 0.0
    %101 = vmatpush.msra.mxu0 0.0
    %102 = vmatpush.msra.mxu0 0.0
    %103 = vmatpush.msra.mxu0 0.0
    %104 = vmatpush.msra.mxu0 0.0
    %105 = vmatpush.msra.mxu0 0.0
    %106 = vmatpush.msra.mxu0 0.0
    %107 = vmatpush.msra.mxu0 0.0
    %108 = vmatpush.msra.mxu0 %v81
    %109 = vmatpush.msra.mxu0 %v80
    %110 = vmatpush.msra.mxu0 %v79
    %111 = vmatpush.msra.mxu0 %v78
    %112 = vmatmul.f32.gmra.mxu0 %v85
    %v113 = vpop.f32.mrf.mxu0
    %v114 = vadd.f32 %v83, %v113
    %115 = vmatmul.f32.gmra.mxu0 %v88
    %v116 = vpop.f32.mrf.mxu0
    %v117 = vadd.f32 %v83, %v116
    %118 = vmatmul.f32.gmra.mxu0 %v91
    %v119 = vpop.f32.mrf.mxu0
    %v120 = vadd.f32 %v83, %v119
    %121 = vmatmul.f32.gmra.mxu0 %v94
    %v122 = vpop.f32.mrf.mxu0
    %v123 = vadd.f32 %v83, %v122
    %124 = vdwg.mxu0
    %v125 = vld [vmem:[%s2] sm:$0xf]
    %vm126 = vcmask 31744
    %v127 = vsel %vm126, %v67, 0
    %v129 = vsel %vm126, %v68, 0
    %v131 = vsel %vm126, %v69, 0
    %v133 = vsel %vm126, %v70, 0
    %vm135 = vcmask 1043456
    %v137 = vsel %vm135, %v125, 0
    %139 = vmatpush.msra.mxu0 0.0
    %140 = vmatpush.msra.mxu0 0.0
    %141 = vmatpush.msra.mxu0 0.0
    %142 = vmatpush.msra.mxu0 0.0
    %143 = vmatpush.msra.mxu0 0.0
    %144 = vmatpush.msra.mxu0 0.0
    %145 = vmatpush.msra.mxu0 0.0
    %146 = vmatpush.msra.mxu0 0.0
    %147 = vmatpush.msra.mxu0 0.0
    %148 = vmatpush.msra.mxu0 0.0
    %149 = vmatpush.msra.mxu0 0.0
    %150 = vmatpush.msra.mxu0 0.0
    %151 = vmatpush.msra.mxu0 0.0
    %152 = vmatpush.msra.mxu0 0.0
    %153 = vmatpush.msra.mxu0 0.0
    %154 = vmatpush.msra.mxu0 %v137
    %155 = vmatmul.f32.gmra.mxu0 %v127
    %v156 = vpop.f32.mrf.mxu0
    %v157 = vadd.f32 0.0, %v156
    %158 = vmatmul.f32.gmra.mxu0 %v129
    %v159 = vpop.f32.mrf.mxu0
    %v160 = vadd.f32 0.0, %v159
    %161 = vmatmul.f32.gmra.mxu0 %v131
    %v162 = vpop.f32.mrf.mxu0
    %v163 = vadd.f32 0.0, %v162
    %164 = vmatmul.f32.gmra.mxu0 %v133
    %v165 = vpop.f32.mrf.mxu0
    %v166 = vadd.f32 0.0, %v165
    %167 = vdwg.mxu0
    %v168 = vrot.slane %v157, 6
    %v169 = vrot.slane %v160, 6
    %v170 = vrot.slane %v163, 6
    %v171 = vrot.slane %v166, 6
    %vm172 = vcmp.lt.s32.totalorder %v72, 2
    %v173 = vsel %vm172, %v170, %v171
    %v174 = vsel %vm172, %v169, %v170
    %v175 = vsel %vm172, %v168, %v169
    %v176 = vsel %vm172, %v171, %v168
    %v177 = vsel %vm74, %v176, 0.0
    %v178 = vsel %vm75, %v175, 0.0
    %v179 = vsel %vm74, %v174, 0.0
    %v180 = vsel %vm75, %v173, 0.0
    %185 = vrot.lane.b32.xlu0 %v157, 124
    %v186 = vpop.permute.xlu0 %185
    %187 = vrot.lane.b32.xlu0 %v160, 124
    %v188 = vpop.permute.xlu0 %187
    %189 = vrot.lane.b32.xlu0 %v163, 124
    %v190 = vpop.permute.xlu0 %189
    %191 = vrot.lane.b32.xlu0 %v166, 124
    %v192 = vpop.permute.xlu0 %191
    %v197 = vadd.f32 %v177, %v186
    %v198 = vadd.f32 %v178, %v188
    %v199 = vadd.f32 %v179, %v190
    %v200 = vadd.f32 %v180, %v192
    %201 = vrot.lane.b32.xlu0 %v157, 120
    %v202 = vpop.permute.xlu0 %201
    %203 = vrot.lane.b32.xlu0 %v160, 120
    %v204 = vpop.permute.xlu0 %203
    %205 = vrot.lane.b32.xlu0 %v163, 120
    %v206 = vpop.permute.xlu0 %205
    %207 = vrot.lane.b32.xlu0 %v166, 120
    %v208 = vpop.permute.xlu0 %207
    %v213 = vrot.slane %v202, 2
    %v214 = vrot.slane %v204, 2
    %v215 = vrot.slane %v206, 2
    %v216 = vrot.slane %v208, 2
    %vm217 = vcmp.lt.s32.totalorder %v72, 6
    %v218 = vsel %vm217, %v215, %v216
    %v219 = vsel %vm217, %v214, %v215
    %v220 = vsel %vm217, %v213, %v214
    %v221 = vsel %vm217, %v216, %v213
    %v222 = vsel %vm76, %v220, 0.0
    %v223 = vsel %vm77, %v219, 0.0
    %v224 = vsel %vm76, %v218, 0.0
    %v225 = vsel %vm77, %v221, 0.0
    %v226 = vadd.f32 %v197, %v222
    %v227 = vadd.f32 %v198, %v223
    %v228 = vadd.f32 %v199, %v224
    %v229 = vadd.f32 %v200, %v225
    %v230 = vld [vmem:[%s2 + $0x1c] sm:$0x1]
    %v231 = vperm.slane %v230, 0
    %v232 = vadd.f32 %v226, %v231
    %v233 = vadd.f32 %v227, %v231
    %v234 = vadd.f32 %v228, %v231
    %v235 = vadd.f32 %v229, %v231
    %v236 = vmax.f32 %v232, 0.0
    %v237 = vmax.f32 %v233, 0.0
    %v238 = vmax.f32 %v234, 0.0
    %v239 = vmax.f32 %v235, 0.0
    %v240 = vld [vmem:[%s1 + $0x40] sm:$0xf]
    %v242 = vsel %vm126, %v236, 0
    %v245 = vsel %vm126, %v237, 0
    %v248 = vsel %vm126, %v238, 0
    %v251 = vsel %vm126, %v239, 0
    %v254 = vsel %vm135, %v240, 0
    %256 = vmatpush.msra.mxu0 0.0
    %257 = vmatpush.msra.mxu0 0.0
    %258 = vmatpush.msra.mxu0 0.0
    %259 = vmatpush.msra.mxu0 0.0
    %260 = vmatpush.msra.mxu0 0.0
    %261 = vmatpush.msra.mxu0 0.0
    %262 = vmatpush.msra.mxu0 0.0
    %263 = vmatpush.msra.mxu0 0.0
    %264 = vmatpush.msra.mxu0 0.0
    %265 = vmatpush.msra.mxu0 0.0
    %266 = vmatpush.msra.mxu0 0.0
    %267 = vmatpush.msra.mxu0 0.0
    %268 = vmatpush.msra.mxu0 0.0
    %269 = vmatpush.msra.mxu0 0.0
    %270 = vmatpush.msra.mxu0 0.0
    %271 = vmatpush.msra.mxu0 %v254
    %272 = vmatmul.f32.gmra.mxu0 %v242
    %v273 = vpop.f32.mrf.mxu0
    %v274 = vadd.f32 0.0, %v273
    %275 = vmatmul.f32.gmra.mxu0 %v245
    %v276 = vpop.f32.mrf.mxu0
    %v277 = vadd.f32 0.0, %v276
    %278 = vmatmul.f32.gmra.mxu0 %v248
    %v279 = vpop.f32.mrf.mxu0
    %v280 = vadd.f32 0.0, %v279
    %281 = vmatmul.f32.gmra.mxu0 %v251
    %v282 = vpop.f32.mrf.mxu0
    %v283 = vadd.f32 0.0, %v282
    %284 = vdwg.mxu0
    %v285 = vadd.f32 %v114, %v274
    %v286 = vadd.f32 %v117, %v277
    %v287 = vadd.f32 %v120, %v280
    %v288 = vadd.f32 %v123, %v283
    %289 = vrot.lane.b32.xlu0 %v67, 124
    %v290 = vpop.permute.xlu0 %289
    %291 = vrot.lane.b32.xlu0 %v68, 124
    %v292 = vpop.permute.xlu0 %291
    %293 = vrot.lane.b32.xlu0 %v69, 124
    %v294 = vpop.permute.xlu0 %293
    %295 = vrot.lane.b32.xlu0 %v70, 124
    %v296 = vpop.permute.xlu0 %295
    %v301 = vadd.f32 %v236, %v290
    %v302 = vadd.f32 %v237, %v292
    %v303 = vadd.f32 %v238, %v294
    %v304 = vadd.f32 %v239, %v296
    %v305 = vld [vmem:[%s2 + $0x4] sm:$0xf]
    %v307 = vsel %vm126, %v301, 0
    %v310 = vsel %vm126, %v302, 0
    %v313 = vsel %vm126, %v303, 0
    %v316 = vsel %vm126, %v304, 0
    %v319 = vsel %vm135, %v305, 0
    %321 = vmatpush.msra.mxu0 0.0
    %322 = vmatpush.msra.mxu0 0.0
    %323 = vmatpush.msra.mxu0 0.0
    %324 = vmatpush.msra.mxu0 0.0
    %325 = vmatpush.msra.mxu0 0.0
    %326 = vmatpush.msra.mxu0 0.0
    %327 = vmatpush.msra.mxu0 0.0
    %328 = vmatpush.msra.mxu0 0.0
    %329 = vmatpush.msra.mxu0 0.0
    %330 = vmatpush.msra.mxu0 0.0
    %331 = vmatpush.msra.mxu0 0.0
    %332 = vmatpush.msra.mxu0 0.0
    %333 = vmatpush.msra.mxu0 0.0
    %334 = vmatpush.msra.mxu0 0.0
    %335 = vmatpush.msra.mxu0 0.0
    %336 = vmatpush.msra.mxu0 %v319
    %337 = vmatmul.f32.gmra.mxu0 %v307
    %v338 = vpop.f32.mrf.mxu0
    %v339 = vadd.f32 0.0, %v338
    %340 = vmatmul.f32.gmra.mxu0 %v310
    %v341 = vpop.f32.mrf.mxu0
    %v342 = vadd.f32 0.0, %v341
    %343 = vmatmul.f32.gmra.mxu0 %v313
    %v344 = vpop.f32.mrf.mxu0
    %v345 = vadd.f32 0.0, %v344
    %346 = vmatmul.f32.gmra.mxu0 %v316
    %v347 = vpop.f32.mrf.mxu0
    %v348 = vadd.f32 0.0, %v347
    %349 = vdwg.mxu0
    %v350 = vrot.slane %v339, 6
    %v351 = vrot.slane %v342, 6
    %v352 = vrot.slane %v345, 6
    %v353 = vrot.slane %v348, 6
    %v354 = vsel %vm172, %v352, %v353
    %v355 = vsel %vm172, %v351, %v352
    %v356 = vsel %vm172, %v350, %v351
    %v357 = vsel %vm172, %v353, %v350
    %v358 = vsel %vm74, %v357, 0.0
    %v359 = vsel %vm75, %v356, 0.0
    %v360 = vsel %vm74, %v355, 0.0
    %v361 = vsel %vm75, %v354, 0.0
    %366 = vrot.lane.b32.xlu0 %v339, 124
    %v367 = vpop.permute.xlu0 %366
    %368 = vrot.lane.b32.xlu0 %v342, 124
    %v369 = vpop.permute.xlu0 %368
    %370 = vrot.lane.b32.xlu0 %v345, 124
    %v371 = vpop.permute.xlu0 %370
    %372 = vrot.lane.b32.xlu0 %v348, 124
    %v373 = vpop.permute.xlu0 %372
    %v378 = vadd.f32 %v358, %v367
    %v379 = vadd.f32 %v359, %v369
    %v380 = vadd.f32 %v360, %v371
    %v381 = vadd.f32 %v361, %v373
    %382 = vrot.lane.b32.xlu0 %v339, 120
    %v383 = vpop.permute.xlu0 %382
    %384 = vrot.lane.b32.xlu0 %v342, 120
    %v385 = vpop.permute.xlu0 %384
    %386 = vrot.lane.b32.xlu0 %v345, 120
    %v387 = vpop.permute.xlu0 %386
    %388 = vrot.lane.b32.xlu0 %v348, 120
    %v389 = vpop.permute.xlu0 %388
    %v394 = vrot.slane %v383, 2
    %v395 = vrot.slane %v385, 2
    %v396 = vrot.slane %v387, 2
    %v397 = vrot.slane %v389, 2
    %v398 = vsel %vm217, %v396, %v397
    %v399 = vsel %vm217, %v395, %v396
    %v400 = vsel %vm217, %v394, %v395
    %v401 = vsel %vm217, %v397, %v394
    %v402 = vsel %vm76, %v400, 0.0
    %v403 = vsel %vm77, %v399, 0.0
    %v404 = vsel %vm76, %v398, 0.0
    %v405 = vsel %vm77, %v401, 0.0
    %v406 = vadd.f32 %v378, %v402
    %v407 = vadd.f32 %v379, %v403
    %v408 = vadd.f32 %v380, %v404
    %v409 = vadd.f32 %v381, %v405
    %v410 = vld [vmem:[%s2 + $0x1d] sm:$0x1]
    %v411 = vperm.slane %v410, 0
    %v412 = vadd.f32 %v406, %v411
    %v413 = vadd.f32 %v407, %v411
    %v414 = vadd.f32 %v408, %v411
    %v415 = vadd.f32 %v409, %v411
    %v416 = vmax.f32 %v412, 0.0
    %v417 = vmax.f32 %v413, 0.0
    %v418 = vmax.f32 %v414, 0.0
    %v419 = vmax.f32 %v415, 0.0
    %v420 = vld [vmem:[%s1 + $0x44] sm:$0xf]
    %v422 = vsel %vm126, %v416, 0
    %v425 = vsel %vm126, %v417, 0
    %v428 = vsel %vm126, %v418, 0
    %v431 = vsel %vm126, %v419, 0
    %v434 = vsel %vm135, %v420, 0
    %436 = vmatpush.msra.mxu0 0.0
    %437 = vmatpush.msra.mxu0 0.0
    %438 = vmatpush.msra.mxu0 0.0
    %439 = vmatpush.msra.mxu0 0.0
    %440 = vmatpush.msra.mxu0 0.0
    %441 = vmatpush.msra.mxu0 0.0
    %442 = vmatpush.msra.mxu0 0.0
    %443 = vmatpush.msra.mxu0 0.0
    %444 = vmatpush.msra.mxu0 0.0
    %445 = vmatpush.msra.mxu0 0.0
    %446 = vmatpush.msra.mxu0 0.0
    %447 = vmatpush.msra.mxu0 0.0
    %448 = vmatpush.msra.mxu0 0.0
    %449 = vmatpush.msra.mxu0 0.0
    %450 = vmatpush.msra.mxu0 0.0
    %451 = vmatpush.msra.mxu0 %v434
    %452 = vmatmul.f32.gmra.mxu0 %v422
    %v453 = vpop.f32.mrf.mxu0
    %v454 = vadd.f32 0.0, %v453
    %455 = vmatmul.f32.gmra.mxu0 %v425
    %v456 = vpop.f32.mrf.mxu0
    %v457 = vadd.f32 0.0, %v456
    %458 = vmatmul.f32.gmra.mxu0 %v428
    %v459 = vpop.f32.mrf.mxu0
    %v460 = vadd.f32 0.0, %v459
    %461 = vmatmul.f32.gmra.mxu0 %v431
    %v462 = vpop.f32.mrf.mxu0
    %v463 = vadd.f32 0.0, %v462
    %464 = vdwg.mxu0
    %v465 = vadd.f32 %v285, %v454
    %v466 = vadd.f32 %v286, %v457
    %v467 = vadd.f32 %v287, %v460
    %v468 = vadd.f32 %v288, %v463
    %469 = vrot.lane.b32.xlu0 %v67, 120
    %v470 = vpop.permute.xlu0 %469
    %471 = vrot.lane.b32.xlu0 %v68, 120
    %v472 = vpop.permute.xlu0 %471
    %473 = vrot.lane.b32.xlu0 %v69, 120
    %v474 = vpop.permute.xlu0 %473
    %475 = vrot.lane.b32.xlu0 %v70, 120
    %v476 = vpop.permute.xlu0 %475
    %v481 = vadd.f32 %v416, %v470
    %v482 = vadd.f32 %v417, %v472
    %v483 = vadd.f32 %v418, %v474
    %v484 = vadd.f32 %v419, %v476
    %v485 = vld [vmem:[%s2 + $0x8] sm:$0xf]
    %v487 = vsel %vm126, %v481, 0
    %v490 = vsel %vm126, %v482, 0
    %v493 = vsel %vm126, %v483, 0
    %v496 = vsel %vm126, %v484, 0
    %v499 = vsel %vm135, %v485, 0
    %501 = vmatpush.msra.mxu0 0.0
    %502 = vmatpush.msra.mxu0 0.0
    %503 = vmatpush.msra.mxu0 0.0
    %504 = vmatpush.msra.mxu0 0.0
    %505 = vmatpush.msra.mxu0 0.0
    %506 = vmatpush.msra.mxu0 0.0
    %507 = vmatpush.msra.mxu0 0.0
    %508 = vmatpush.msra.mxu0 0.0
    %509 = vmatpush.msra.mxu0 0.0
    %510 = vmatpush.msra.mxu0 0.0
    %511 = vmatpush.msra.mxu0 0.0
    %512 = vmatpush.msra.mxu0 0.0
    %513 = vmatpush.msra.mxu0 0.0
    %514 = vmatpush.msra.mxu0 0.0
    %515 = vmatpush.msra.mxu0 0.0
    %516 = vmatpush.msra.mxu0 %v499
    %517 = vmatmul.f32.gmra.mxu0 %v487
    %v518 = vpop.f32.mrf.mxu0
    %v519 = vadd.f32 0.0, %v518
    %520 = vmatmul.f32.gmra.mxu0 %v490
    %v521 = vpop.f32.mrf.mxu0
    %v522 = vadd.f32 0.0, %v521
    %523 = vmatmul.f32.gmra.mxu0 %v493
    %v524 = vpop.f32.mrf.mxu0
    %v525 = vadd.f32 0.0, %v524
    %526 = vmatmul.f32.gmra.mxu0 %v496
    %v527 = vpop.f32.mrf.mxu0
    %v528 = vadd.f32 0.0, %v527
    %529 = vdwg.mxu0
    %v530 = vrot.slane %v519, 6
    %v531 = vrot.slane %v522, 6
    %v532 = vrot.slane %v525, 6
    %v533 = vrot.slane %v528, 6
    %v534 = vsel %vm172, %v532, %v533
    %v535 = vsel %vm172, %v531, %v532
    %v536 = vsel %vm172, %v530, %v531
    %v537 = vsel %vm172, %v533, %v530
    %v538 = vsel %vm74, %v537, 0.0
    %v539 = vsel %vm75, %v536, 0.0
    %v540 = vsel %vm74, %v535, 0.0
    %v541 = vsel %vm75, %v534, 0.0
    %546 = vrot.lane.b32.xlu0 %v519, 124
    %v547 = vpop.permute.xlu0 %546
    %548 = vrot.lane.b32.xlu0 %v522, 124
    %v549 = vpop.permute.xlu0 %548
    %550 = vrot.lane.b32.xlu0 %v525, 124
    %v551 = vpop.permute.xlu0 %550
    %552 = vrot.lane.b32.xlu0 %v528, 124
    %v553 = vpop.permute.xlu0 %552
    %v558 = vadd.f32 %v538, %v547
    %v559 = vadd.f32 %v539, %v549
    %v560 = vadd.f32 %v540, %v551
    %v561 = vadd.f32 %v541, %v553
    %562 = vrot.lane.b32.xlu0 %v519, 120
    %v563 = vpop.permute.xlu0 %562
    %564 = vrot.lane.b32.xlu0 %v522, 120
    %v565 = vpop.permute.xlu0 %564
    %566 = vrot.lane.b32.xlu0 %v525, 120
    %v567 = vpop.permute.xlu0 %566
    %568 = vrot.lane.b32.xlu0 %v528, 120
    %v569 = vpop.permute.xlu0 %568
    %v574 = vrot.slane %v563, 2
    %v575 = vrot.slane %v565, 2
    %v576 = vrot.slane %v567, 2
    %v577 = vrot.slane %v569, 2
    %v578 = vsel %vm217, %v576, %v577
    %v579 = vsel %vm217, %v575, %v576
    %v580 = vsel %vm217, %v574, %v575
    %v581 = vsel %vm217, %v577, %v574
    %v582 = vsel %vm76, %v580, 0.0
    %v583 = vsel %vm77, %v579, 0.0
    %v584 = vsel %vm76, %v578, 0.0
    %v585 = vsel %vm77, %v581, 0.0
    %v586 = vadd.f32 %v558, %v582
    %v587 = vadd.f32 %v559, %v583
    %v588 = vadd.f32 %v560, %v584
    %v589 = vadd.f32 %v561, %v585
    %v590 = vld [vmem:[%s2 + $0x1e] sm:$0x1]
    %v591 = vperm.slane %v590, 0
    %v592 = vadd.f32 %v586, %v591
    %v593 = vadd.f32 %v587, %v591
    %v594 = vadd.f32 %v588, %v591
    %v595 = vadd.f32 %v589, %v591
    %v596 = vmax.f32 %v592, 0.0
    %v597 = vmax.f32 %v593, 0.0
    %v598 = vmax.f32 %v594, 0.0
    %v599 = vmax.f32 %v595, 0.0
    %v600 = vld [vmem:[%s1 + $0x48] sm:$0xf]
    %v602 = vsel %vm126, %v596, 0
    %v605 = vsel %vm126, %v597, 0
    %v608 = vsel %vm126, %v598, 0
    %v611 = vsel %vm126, %v599, 0
    %v614 = vsel %vm135, %v600, 0
    %616 = vmatpush.msra.mxu0 0.0
    %617 = vmatpush.msra.mxu0 0.0
    %618 = vmatpush.msra.mxu0 0.0
    %619 = vmatpush.msra.mxu0 0.0
    %620 = vmatpush.msra.mxu0 0.0
    %621 = vmatpush.msra.mxu0 0.0
    %622 = vmatpush.msra.mxu0 0.0
    %623 = vmatpush.msra.mxu0 0.0
    %624 = vmatpush.msra.mxu0 0.0
    %625 = vmatpush.msra.mxu0 0.0
    %626 = vmatpush.msra.mxu0 0.0
    %627 = vmatpush.msra.mxu0 0.0
    %628 = vmatpush.msra.mxu0 0.0
    %629 = vmatpush.msra.mxu0 0.0
    %630 = vmatpush.msra.mxu0 0.0
    %631 = vmatpush.msra.mxu0 %v614
    %632 = vmatmul.f32.gmra.mxu0 %v602
    %v633 = vpop.f32.mrf.mxu0
    %v634 = vadd.f32 0.0, %v633
    %635 = vmatmul.f32.gmra.mxu0 %v605
    %v636 = vpop.f32.mrf.mxu0
    %v637 = vadd.f32 0.0, %v636
    %638 = vmatmul.f32.gmra.mxu0 %v608
    %v639 = vpop.f32.mrf.mxu0
    %v640 = vadd.f32 0.0, %v639
    %641 = vmatmul.f32.gmra.mxu0 %v611
    %v642 = vpop.f32.mrf.mxu0
    %v643 = vadd.f32 0.0, %v642
    %644 = vdwg.mxu0
    %v645 = vadd.f32 %v465, %v634
    %v646 = vadd.f32 %v466, %v637
    %v647 = vadd.f32 %v467, %v640
    %v648 = vadd.f32 %v468, %v643
    %649 = vrot.lane.b32.xlu0 %v67, 116
    %v650 = vpop.permute.xlu0 %649
    %651 = vrot.lane.b32.xlu0 %v68, 116
    %v652 = vpop.permute.xlu0 %651
    %653 = vrot.lane.b32.xlu0 %v69, 116
    %v654 = vpop.permute.xlu0 %653
    %655 = vrot.lane.b32.xlu0 %v70, 116
    %v656 = vpop.permute.xlu0 %655
    %v661 = vadd.f32 %v596, %v650
    %v662 = vadd.f32 %v597, %v652
    %v663 = vadd.f32 %v598, %v654
    %v664 = vadd.f32 %v599, %v656
    %v665 = vld [vmem:[%s2 + $0xc] sm:$0xf]
    %v667 = vsel %vm126, %v661, 0
    %v670 = vsel %vm126, %v662, 0
    %v673 = vsel %vm126, %v663, 0
    %v676 = vsel %vm126, %v664, 0
    %v679 = vsel %vm135, %v665, 0
    %681 = vmatpush.msra.mxu0 0.0
    %682 = vmatpush.msra.mxu0 0.0
    %683 = vmatpush.msra.mxu0 0.0
    %684 = vmatpush.msra.mxu0 0.0
    %685 = vmatpush.msra.mxu0 0.0
    %686 = vmatpush.msra.mxu0 0.0
    %687 = vmatpush.msra.mxu0 0.0
    %688 = vmatpush.msra.mxu0 0.0
    %689 = vmatpush.msra.mxu0 0.0
    %690 = vmatpush.msra.mxu0 0.0
    %691 = vmatpush.msra.mxu0 0.0
    %692 = vmatpush.msra.mxu0 0.0
    %693 = vmatpush.msra.mxu0 0.0
    %694 = vmatpush.msra.mxu0 0.0
    %695 = vmatpush.msra.mxu0 0.0
    %696 = vmatpush.msra.mxu0 %v679
    %697 = vmatmul.f32.gmra.mxu0 %v667
    %v698 = vpop.f32.mrf.mxu0
    %v699 = vadd.f32 0.0, %v698
    %700 = vmatmul.f32.gmra.mxu0 %v670
    %v701 = vpop.f32.mrf.mxu0
    %v702 = vadd.f32 0.0, %v701
    %703 = vmatmul.f32.gmra.mxu0 %v673
    %v704 = vpop.f32.mrf.mxu0
    %v705 = vadd.f32 0.0, %v704
    %706 = vmatmul.f32.gmra.mxu0 %v676
    %v707 = vpop.f32.mrf.mxu0
    %v708 = vadd.f32 0.0, %v707
    %709 = vdwg.mxu0
    %v710 = vrot.slane %v699, 6
    %v711 = vrot.slane %v702, 6
    %v712 = vrot.slane %v705, 6
    %v713 = vrot.slane %v708, 6
    %v714 = vsel %vm172, %v712, %v713
    %v715 = vsel %vm172, %v711, %v712
    %v716 = vsel %vm172, %v710, %v711
    %v717 = vsel %vm172, %v713, %v710
    %v718 = vsel %vm74, %v717, 0.0
    %v719 = vsel %vm75, %v716, 0.0
    %v720 = vsel %vm74, %v715, 0.0
    %v721 = vsel %vm75, %v714, 0.0
    %726 = vrot.lane.b32.xlu0 %v699, 124
    %v727 = vpop.permute.xlu0 %726
    %728 = vrot.lane.b32.xlu0 %v702, 124
    %v729 = vpop.permute.xlu0 %728
    %730 = vrot.lane.b32.xlu0 %v705, 124
    %v731 = vpop.permute.xlu0 %730
    %732 = vrot.lane.b32.xlu0 %v708, 124
    %v733 = vpop.permute.xlu0 %732
    %v738 = vadd.f32 %v718, %v727
    %v739 = vadd.f32 %v719, %v729
    %v740 = vadd.f32 %v720, %v731
    %v741 = vadd.f32 %v721, %v733
    %742 = vrot.lane.b32.xlu0 %v699, 120
    %v743 = vpop.permute.xlu0 %742
    %744 = vrot.lane.b32.xlu0 %v702, 120
    %v745 = vpop.permute.xlu0 %744
    %746 = vrot.lane.b32.xlu0 %v705, 120
    %v747 = vpop.permute.xlu0 %746
    %748 = vrot.lane.b32.xlu0 %v708, 120
    %v749 = vpop.permute.xlu0 %748
    %v754 = vrot.slane %v743, 2
    %v755 = vrot.slane %v745, 2
    %v756 = vrot.slane %v747, 2
    %v757 = vrot.slane %v749, 2
    %v758 = vsel %vm217, %v756, %v757
    %v759 = vsel %vm217, %v755, %v756
    %v760 = vsel %vm217, %v754, %v755
    %v761 = vsel %vm217, %v757, %v754
    %v762 = vsel %vm76, %v760, 0.0
    %v763 = vsel %vm77, %v759, 0.0
    %v764 = vsel %vm76, %v758, 0.0
    %v765 = vsel %vm77, %v761, 0.0
    %v766 = vadd.f32 %v738, %v762
    %v767 = vadd.f32 %v739, %v763
    %v768 = vadd.f32 %v740, %v764
    %v769 = vadd.f32 %v741, %v765
    %v770 = vld [vmem:[%s2 + $0x1f] sm:$0x1]
    %v771 = vperm.slane %v770, 0
    %v772 = vadd.f32 %v766, %v771
    %v773 = vadd.f32 %v767, %v771
    %v774 = vadd.f32 %v768, %v771
    %v775 = vadd.f32 %v769, %v771
    %v776 = vmax.f32 %v772, 0.0
    %v777 = vmax.f32 %v773, 0.0
    %v778 = vmax.f32 %v774, 0.0
    %v779 = vmax.f32 %v775, 0.0
    %v780 = vld [vmem:[%s1 + $0x4c] sm:$0xf]
    %v782 = vsel %vm126, %v776, 0
    %v785 = vsel %vm126, %v777, 0
    %v788 = vsel %vm126, %v778, 0
    %v791 = vsel %vm126, %v779, 0
    %v794 = vsel %vm135, %v780, 0
    %796 = vmatpush.msra.mxu0 0.0
    %797 = vmatpush.msra.mxu0 0.0
    %798 = vmatpush.msra.mxu0 0.0
    %799 = vmatpush.msra.mxu0 0.0
    %800 = vmatpush.msra.mxu0 0.0
    %801 = vmatpush.msra.mxu0 0.0
    %802 = vmatpush.msra.mxu0 0.0
    %803 = vmatpush.msra.mxu0 0.0
    %804 = vmatpush.msra.mxu0 0.0
    %805 = vmatpush.msra.mxu0 0.0
    %806 = vmatpush.msra.mxu0 0.0
    %807 = vmatpush.msra.mxu0 0.0
    %808 = vmatpush.msra.mxu0 0.0
    %809 = vmatpush.msra.mxu0 0.0
    %810 = vmatpush.msra.mxu0 0.0
    %811 = vmatpush.msra.mxu0 %v794
    %812 = vmatmul.f32.gmra.mxu0 %v782
    %v813 = vpop.f32.mrf.mxu0
    %v814 = vadd.f32 0.0, %v813
    %815 = vmatmul.f32.gmra.mxu0 %v785
    %v816 = vpop.f32.mrf.mxu0
    %v817 = vadd.f32 0.0, %v816
    %818 = vmatmul.f32.gmra.mxu0 %v788
    %v819 = vpop.f32.mrf.mxu0
    %v820 = vadd.f32 0.0, %v819
    %821 = vmatmul.f32.gmra.mxu0 %v791
    %v822 = vpop.f32.mrf.mxu0
    %v823 = vadd.f32 0.0, %v822
    %824 = vdwg.mxu0
    %v825 = vadd.f32 %v645, %v814
    %v826 = vadd.f32 %v646, %v817
    %v827 = vadd.f32 %v647, %v820
    %v828 = vadd.f32 %v648, %v823
    %829 = vrot.lane.b32.xlu0 %v67, 112
    %v830 = vpop.permute.xlu0 %829
    %831 = vrot.lane.b32.xlu0 %v68, 112
    %v832 = vpop.permute.xlu0 %831
    %833 = vrot.lane.b32.xlu0 %v69, 112
    %v834 = vpop.permute.xlu0 %833
    %835 = vrot.lane.b32.xlu0 %v70, 112
    %v836 = vpop.permute.xlu0 %835
    %v841 = vadd.f32 %v776, %v830
    %v842 = vadd.f32 %v777, %v832
    %v843 = vadd.f32 %v778, %v834
    %v844 = vadd.f32 %v779, %v836
    %v845 = vld [vmem:[%s2 + $0x10] sm:$0xf]
    %v847 = vsel %vm126, %v841, 0
    %v850 = vsel %vm126, %v842, 0
    %v853 = vsel %vm126, %v843, 0
    %v856 = vsel %vm126, %v844, 0
    %v859 = vsel %vm135, %v845, 0
    %861 = vmatpush.msra.mxu0 0.0
    %862 = vmatpush.msra.mxu0 0.0
    %863 = vmatpush.msra.mxu0 0.0
    %864 = vmatpush.msra.mxu0 0.0
    %865 = vmatpush.msra.mxu0 0.0
    %866 = vmatpush.msra.mxu0 0.0
    %867 = vmatpush.msra.mxu0 0.0
    %868 = vmatpush.msra.mxu0 0.0
    %869 = vmatpush.msra.mxu0 0.0
    %870 = vmatpush.msra.mxu0 0.0
    %871 = vmatpush.msra.mxu0 0.0
    %872 = vmatpush.msra.mxu0 0.0
    %873 = vmatpush.msra.mxu0 0.0
    %874 = vmatpush.msra.mxu0 0.0
    %875 = vmatpush.msra.mxu0 0.0
    %876 = vmatpush.msra.mxu0 %v859
    %877 = vmatmul.f32.gmra.mxu0 %v847
    %v878 = vpop.f32.mrf.mxu0
    %v879 = vadd.f32 0.0, %v878
    %880 = vmatmul.f32.gmra.mxu0 %v850
    %v881 = vpop.f32.mrf.mxu0
    %v882 = vadd.f32 0.0, %v881
    %883 = vmatmul.f32.gmra.mxu0 %v853
    %v884 = vpop.f32.mrf.mxu0
    %v885 = vadd.f32 0.0, %v884
    %886 = vmatmul.f32.gmra.mxu0 %v856
    %v887 = vpop.f32.mrf.mxu0
    %v888 = vadd.f32 0.0, %v887
    %889 = vdwg.mxu0
    %v890 = vrot.slane %v879, 6
    %v891 = vrot.slane %v882, 6
    %v892 = vrot.slane %v885, 6
    %v893 = vrot.slane %v888, 6
    %v894 = vsel %vm172, %v892, %v893
    %v895 = vsel %vm172, %v891, %v892
    %v896 = vsel %vm172, %v890, %v891
    %v897 = vsel %vm172, %v893, %v890
    %v898 = vsel %vm74, %v897, 0.0
    %v899 = vsel %vm75, %v896, 0.0
    %v900 = vsel %vm74, %v895, 0.0
    %v901 = vsel %vm75, %v894, 0.0
    %906 = vrot.lane.b32.xlu0 %v879, 124
    %v907 = vpop.permute.xlu0 %906
    %908 = vrot.lane.b32.xlu0 %v882, 124
    %v909 = vpop.permute.xlu0 %908
    %910 = vrot.lane.b32.xlu0 %v885, 124
    %v911 = vpop.permute.xlu0 %910
    %912 = vrot.lane.b32.xlu0 %v888, 124
    %v913 = vpop.permute.xlu0 %912
    %v918 = vadd.f32 %v898, %v907
    %v919 = vadd.f32 %v899, %v909
    %v920 = vadd.f32 %v900, %v911
    %v921 = vadd.f32 %v901, %v913
    %922 = vrot.lane.b32.xlu0 %v879, 120
    %v923 = vpop.permute.xlu0 %922
    %924 = vrot.lane.b32.xlu0 %v882, 120
    %v925 = vpop.permute.xlu0 %924
    %926 = vrot.lane.b32.xlu0 %v885, 120
    %v927 = vpop.permute.xlu0 %926
    %928 = vrot.lane.b32.xlu0 %v888, 120
    %v929 = vpop.permute.xlu0 %928
    %v934 = vrot.slane %v923, 2
    %v935 = vrot.slane %v925, 2
    %v936 = vrot.slane %v927, 2
    %v937 = vrot.slane %v929, 2
    %v938 = vsel %vm217, %v936, %v937
    %v939 = vsel %vm217, %v935, %v936
    %v940 = vsel %vm217, %v934, %v935
    %v941 = vsel %vm217, %v937, %v934
    %v942 = vsel %vm76, %v940, 0.0
    %v943 = vsel %vm77, %v939, 0.0
    %v944 = vsel %vm76, %v938, 0.0
    %v945 = vsel %vm77, %v941, 0.0
    %v946 = vadd.f32 %v918, %v942
    %v947 = vadd.f32 %v919, %v943
    %v948 = vadd.f32 %v920, %v944
    %v949 = vadd.f32 %v921, %v945
    %v950 = vld [vmem:[%s2 + $0x20] sm:$0x1]
    %v951 = vperm.slane %v950, 0
    %v952 = vadd.f32 %v946, %v951
    %v953 = vadd.f32 %v947, %v951
    %v954 = vadd.f32 %v948, %v951
    %v955 = vadd.f32 %v949, %v951
    %v956 = vmax.f32 %v952, 0.0
    %v957 = vmax.f32 %v953, 0.0
    %v958 = vmax.f32 %v954, 0.0
    %v959 = vmax.f32 %v955, 0.0
    %v960 = vld [vmem:[%s1 + $0x50] sm:$0xf]
    %v962 = vsel %vm126, %v956, 0
    %v965 = vsel %vm126, %v957, 0
    %v968 = vsel %vm126, %v958, 0
    %v971 = vsel %vm126, %v959, 0
    %v974 = vsel %vm135, %v960, 0
    %976 = vmatpush.msra.mxu0 0.0
    %977 = vmatpush.msra.mxu0 0.0
    %978 = vmatpush.msra.mxu0 0.0
    %979 = vmatpush.msra.mxu0 0.0
    %980 = vmatpush.msra.mxu0 0.0
    %981 = vmatpush.msra.mxu0 0.0
    %982 = vmatpush.msra.mxu0 0.0
    %983 = vmatpush.msra.mxu0 0.0
    %984 = vmatpush.msra.mxu0 0.0
    %985 = vmatpush.msra.mxu0 0.0
    %986 = vmatpush.msra.mxu0 0.0
    %987 = vmatpush.msra.mxu0 0.0
    %988 = vmatpush.msra.mxu0 0.0
    %989 = vmatpush.msra.mxu0 0.0
    %990 = vmatpush.msra.mxu0 0.0
    %991 = vmatpush.msra.mxu0 %v974
    %992 = vmatmul.f32.gmra.mxu0 %v962
    %v993 = vpop.f32.mrf.mxu0
    %v994 = vadd.f32 0.0, %v993
    %995 = vmatmul.f32.gmra.mxu0 %v965
    %v996 = vpop.f32.mrf.mxu0
    %v997 = vadd.f32 0.0, %v996
    %998 = vmatmul.f32.gmra.mxu0 %v968
    %v999 = vpop.f32.mrf.mxu0
    %v1000 = vadd.f32 0.0, %v999
    %1001 = vmatmul.f32.gmra.mxu0 %v971
    %v1002 = vpop.f32.mrf.mxu0
    %v1003 = vadd.f32 0.0, %v1002
    %1004 = vdwg.mxu0
    %v1005 = vadd.f32 %v825, %v994
    %v1006 = vadd.f32 %v826, %v997
    %v1007 = vadd.f32 %v827, %v1000
    %v1008 = vadd.f32 %v828, %v1003
    %1009 = vrot.lane.b32.xlu0 %v67, 108
    %v1010 = vpop.permute.xlu0 %1009
    %1011 = vrot.lane.b32.xlu0 %v68, 108
    %v1012 = vpop.permute.xlu0 %1011
    %1013 = vrot.lane.b32.xlu0 %v69, 108
    %v1014 = vpop.permute.xlu0 %1013
    %1015 = vrot.lane.b32.xlu0 %v70, 108
    %v1016 = vpop.permute.xlu0 %1015
    %v1021 = vadd.f32 %v956, %v1010
    %v1022 = vadd.f32 %v957, %v1012
    %v1023 = vadd.f32 %v958, %v1014
    %v1024 = vadd.f32 %v959, %v1016
    %v1025 = vld [vmem:[%s2 + $0x14] sm:$0xf]
    %v1027 = vsel %vm126, %v1021, 0
    %v1030 = vsel %vm126, %v1022, 0
    %v1033 = vsel %vm126, %v1023, 0
    %v1036 = vsel %vm126, %v1024, 0
    %v1039 = vsel %vm135, %v1025, 0
    %1041 = vmatpush.msra.mxu0 0.0
    %1042 = vmatpush.msra.mxu0 0.0
    %1043 = vmatpush.msra.mxu0 0.0
    %1044 = vmatpush.msra.mxu0 0.0
    %1045 = vmatpush.msra.mxu0 0.0
    %1046 = vmatpush.msra.mxu0 0.0
    %1047 = vmatpush.msra.mxu0 0.0
    %1048 = vmatpush.msra.mxu0 0.0
    %1049 = vmatpush.msra.mxu0 0.0
    %1050 = vmatpush.msra.mxu0 0.0
    %1051 = vmatpush.msra.mxu0 0.0
    %1052 = vmatpush.msra.mxu0 0.0
    %1053 = vmatpush.msra.mxu0 0.0
    %1054 = vmatpush.msra.mxu0 0.0
    %1055 = vmatpush.msra.mxu0 0.0
    %1056 = vmatpush.msra.mxu0 %v1039
    %1057 = vmatmul.f32.gmra.mxu0 %v1027
    %v1058 = vpop.f32.mrf.mxu0
    %v1059 = vadd.f32 0.0, %v1058
    %1060 = vmatmul.f32.gmra.mxu0 %v1030
    %v1061 = vpop.f32.mrf.mxu0
    %v1062 = vadd.f32 0.0, %v1061
    %1063 = vmatmul.f32.gmra.mxu0 %v1033
    %v1064 = vpop.f32.mrf.mxu0
    %v1065 = vadd.f32 0.0, %v1064
    %1066 = vmatmul.f32.gmra.mxu0 %v1036
    %v1067 = vpop.f32.mrf.mxu0
    %v1068 = vadd.f32 0.0, %v1067
    %1069 = vdwg.mxu0
    %v1070 = vrot.slane %v1059, 6
    %v1071 = vrot.slane %v1062, 6
    %v1072 = vrot.slane %v1065, 6
    %v1073 = vrot.slane %v1068, 6
    %v1074 = vsel %vm172, %v1072, %v1073
    %v1075 = vsel %vm172, %v1071, %v1072
    %v1076 = vsel %vm172, %v1070, %v1071
    %v1077 = vsel %vm172, %v1073, %v1070
    %v1078 = vsel %vm74, %v1077, 0.0
    %v1079 = vsel %vm75, %v1076, 0.0
    %v1080 = vsel %vm74, %v1075, 0.0
    %v1081 = vsel %vm75, %v1074, 0.0
    %1086 = vrot.lane.b32.xlu0 %v1059, 124
    %v1087 = vpop.permute.xlu0 %1086
    %1088 = vrot.lane.b32.xlu0 %v1062, 124
    %v1089 = vpop.permute.xlu0 %1088
    %1090 = vrot.lane.b32.xlu0 %v1065, 124
    %v1091 = vpop.permute.xlu0 %1090
    %1092 = vrot.lane.b32.xlu0 %v1068, 124
    %v1093 = vpop.permute.xlu0 %1092
    %v1098 = vadd.f32 %v1078, %v1087
    %v1099 = vadd.f32 %v1079, %v1089
    %v1100 = vadd.f32 %v1080, %v1091
    %v1101 = vadd.f32 %v1081, %v1093
    %1102 = vrot.lane.b32.xlu0 %v1059, 120
    %v1103 = vpop.permute.xlu0 %1102
    %1104 = vrot.lane.b32.xlu0 %v1062, 120
    %v1105 = vpop.permute.xlu0 %1104
    %1106 = vrot.lane.b32.xlu0 %v1065, 120
    %v1107 = vpop.permute.xlu0 %1106
    %1108 = vrot.lane.b32.xlu0 %v1068, 120
    %v1109 = vpop.permute.xlu0 %1108
    %v1114 = vrot.slane %v1103, 2
    %v1115 = vrot.slane %v1105, 2
    %v1116 = vrot.slane %v1107, 2
    %v1117 = vrot.slane %v1109, 2
    %v1118 = vsel %vm217, %v1116, %v1117
    %v1119 = vsel %vm217, %v1115, %v1116
    %v1120 = vsel %vm217, %v1114, %v1115
    %v1121 = vsel %vm217, %v1117, %v1114
    %v1122 = vsel %vm76, %v1120, 0.0
    %v1123 = vsel %vm77, %v1119, 0.0
    %v1124 = vsel %vm76, %v1118, 0.0
    %v1125 = vsel %vm77, %v1121, 0.0
    %v1126 = vadd.f32 %v1098, %v1122
    %v1127 = vadd.f32 %v1099, %v1123
    %v1128 = vadd.f32 %v1100, %v1124
    %v1129 = vadd.f32 %v1101, %v1125
    %v1130 = vld [vmem:[%s2 + $0x21] sm:$0x1]
    %v1131 = vperm.slane %v1130, 0
    %v1132 = vadd.f32 %v1126, %v1131
    %v1133 = vadd.f32 %v1127, %v1131
    %v1134 = vadd.f32 %v1128, %v1131
    %v1135 = vadd.f32 %v1129, %v1131
    %v1136 = vmax.f32 %v1132, 0.0
    %v1137 = vmax.f32 %v1133, 0.0
    %v1138 = vmax.f32 %v1134, 0.0
    %v1139 = vmax.f32 %v1135, 0.0
    %v1140 = vld [vmem:[%s1 + $0x54] sm:$0xf]
    %v1142 = vsel %vm126, %v1136, 0
    %v1145 = vsel %vm126, %v1137, 0
    %v1148 = vsel %vm126, %v1138, 0
    %v1151 = vsel %vm126, %v1139, 0
    %v1154 = vsel %vm135, %v1140, 0
    %1156 = vmatpush.msra.mxu0 0.0
    %1157 = vmatpush.msra.mxu0 0.0
    %1158 = vmatpush.msra.mxu0 0.0
    %1159 = vmatpush.msra.mxu0 0.0
    %1160 = vmatpush.msra.mxu0 0.0
    %1161 = vmatpush.msra.mxu0 0.0
    %1162 = vmatpush.msra.mxu0 0.0
    %1163 = vmatpush.msra.mxu0 0.0
    %1164 = vmatpush.msra.mxu0 0.0
    %1165 = vmatpush.msra.mxu0 0.0
    %1166 = vmatpush.msra.mxu0 0.0
    %1167 = vmatpush.msra.mxu0 0.0
    %1168 = vmatpush.msra.mxu0 0.0
    %1169 = vmatpush.msra.mxu0 0.0
    %1170 = vmatpush.msra.mxu0 0.0
    %1171 = vmatpush.msra.mxu0 %v1154
    %1172 = vmatmul.f32.gmra.mxu0 %v1142
    %v1173 = vpop.f32.mrf.mxu0
    %v1174 = vadd.f32 0.0, %v1173
    %1175 = vmatmul.f32.gmra.mxu0 %v1145
    %v1176 = vpop.f32.mrf.mxu0
    %v1177 = vadd.f32 0.0, %v1176
    %1178 = vmatmul.f32.gmra.mxu0 %v1148
    %v1179 = vpop.f32.mrf.mxu0
    %v1180 = vadd.f32 0.0, %v1179
    %1181 = vmatmul.f32.gmra.mxu0 %v1151
    %v1182 = vpop.f32.mrf.mxu0
    %v1183 = vadd.f32 0.0, %v1182
    %1184 = vdwg.mxu0
    %v1185 = vadd.f32 %v1005, %v1174
    %v1186 = vadd.f32 %v1006, %v1177
    %v1187 = vadd.f32 %v1007, %v1180
    %v1188 = vadd.f32 %v1008, %v1183
    %1189 = vrot.lane.b32.xlu0 %v67, 104
    %v1190 = vpop.permute.xlu0 %1189
    %1191 = vrot.lane.b32.xlu0 %v68, 104
    %v1192 = vpop.permute.xlu0 %1191
    %1193 = vrot.lane.b32.xlu0 %v69, 104
    %v1194 = vpop.permute.xlu0 %1193
    %1195 = vrot.lane.b32.xlu0 %v70, 104
    %v1196 = vpop.permute.xlu0 %1195
    %v1201 = vadd.f32 %v1136, %v1190
    %v1202 = vadd.f32 %v1137, %v1192
    %v1203 = vadd.f32 %v1138, %v1194
    %v1204 = vadd.f32 %v1139, %v1196
    %v1205 = vld [vmem:[%s2 + $0x18] sm:$0xf]
    %v1207 = vsel %vm126, %v1201, 0
    %v1210 = vsel %vm126, %v1202, 0
    %v1213 = vsel %vm126, %v1203, 0
    %v1216 = vsel %vm126, %v1204, 0
    %v1219 = vsel %vm135, %v1205, 0
    %1221 = vmatpush.msra.mxu0 0.0
    %1222 = vmatpush.msra.mxu0 0.0
    %1223 = vmatpush.msra.mxu0 0.0
    %1224 = vmatpush.msra.mxu0 0.0
    %1225 = vmatpush.msra.mxu0 0.0
    %1226 = vmatpush.msra.mxu0 0.0
    %1227 = vmatpush.msra.mxu0 0.0
    %1228 = vmatpush.msra.mxu0 0.0
    %1229 = vmatpush.msra.mxu0 0.0
    %1230 = vmatpush.msra.mxu0 0.0
    %1231 = vmatpush.msra.mxu0 0.0
    %1232 = vmatpush.msra.mxu0 0.0
    %1233 = vmatpush.msra.mxu0 0.0
    %1234 = vmatpush.msra.mxu0 0.0
    %1235 = vmatpush.msra.mxu0 0.0
    %1236 = vmatpush.msra.mxu0 %v1219
    %1237 = vmatmul.f32.gmra.mxu0 %v1207
    %v1238 = vpop.f32.mrf.mxu0
    %v1239 = vadd.f32 0.0, %v1238
    %1240 = vmatmul.f32.gmra.mxu0 %v1210
    %v1241 = vpop.f32.mrf.mxu0
    %v1242 = vadd.f32 0.0, %v1241
    %1243 = vmatmul.f32.gmra.mxu0 %v1213
    %v1244 = vpop.f32.mrf.mxu0
    %v1245 = vadd.f32 0.0, %v1244
    %1246 = vmatmul.f32.gmra.mxu0 %v1216
    %v1247 = vpop.f32.mrf.mxu0
    %v1248 = vadd.f32 0.0, %v1247
    %1249 = vdwg.mxu0
    %v1250 = vrot.slane %v1239, 6
    %v1251 = vrot.slane %v1242, 6
    %v1252 = vrot.slane %v1245, 6
    %v1253 = vrot.slane %v1248, 6
    %v1254 = vsel %vm172, %v1252, %v1253
    %v1255 = vsel %vm172, %v1251, %v1252
    %v1256 = vsel %vm172, %v1250, %v1251
    %v1257 = vsel %vm172, %v1253, %v1250
    %v1258 = vsel %vm74, %v1257, 0.0
    %v1259 = vsel %vm75, %v1256, 0.0
    %v1260 = vsel %vm74, %v1255, 0.0
    %v1261 = vsel %vm75, %v1254, 0.0
    %1266 = vrot.lane.b32.xlu0 %v1239, 124
    %v1267 = vpop.permute.xlu0 %1266
    %1268 = vrot.lane.b32.xlu0 %v1242, 124
    %v1269 = vpop.permute.xlu0 %1268
    %1270 = vrot.lane.b32.xlu0 %v1245, 124
    %v1271 = vpop.permute.xlu0 %1270
    %1272 = vrot.lane.b32.xlu0 %v1248, 124
    %v1273 = vpop.permute.xlu0 %1272
    %v1278 = vadd.f32 %v1258, %v1267
    %v1279 = vadd.f32 %v1259, %v1269
    %v1280 = vadd.f32 %v1260, %v1271
    %v1281 = vadd.f32 %v1261, %v1273
    %1282 = vrot.lane.b32.xlu0 %v1239, 120
    %v1283 = vpop.permute.xlu0 %1282
    %1284 = vrot.lane.b32.xlu0 %v1242, 120
    %v1285 = vpop.permute.xlu0 %1284
    %1286 = vrot.lane.b32.xlu0 %v1245, 120
    %v1287 = vpop.permute.xlu0 %1286
    %1288 = vrot.lane.b32.xlu0 %v1248, 120
    %v1289 = vpop.permute.xlu0 %1288
    %v1294 = vrot.slane %v1283, 2
    %v1295 = vrot.slane %v1285, 2
    %v1296 = vrot.slane %v1287, 2
    %v1297 = vrot.slane %v1289, 2
    %v1298 = vsel %vm217, %v1296, %v1297
    %v1299 = vsel %vm217, %v1295, %v1296
    %v1300 = vsel %vm217, %v1294, %v1295
    %v1301 = vsel %vm217, %v1297, %v1294
    %v1302 = vsel %vm76, %v1300, 0.0
    %v1303 = vsel %vm77, %v1299, 0.0
    %v1304 = vsel %vm76, %v1298, 0.0
    %v1305 = vsel %vm77, %v1301, 0.0
    %v1306 = vadd.f32 %v1278, %v1302
    %v1307 = vadd.f32 %v1279, %v1303
    %v1308 = vadd.f32 %v1280, %v1304
    %v1309 = vadd.f32 %v1281, %v1305
    %v1310 = vld [vmem:[%s2 + $0x22] sm:$0x1]
    %v1311 = vperm.slane %v1310, 0
    %v1312 = vadd.f32 %v1306, %v1311
    %v1313 = vadd.f32 %v1307, %v1311
    %v1314 = vadd.f32 %v1308, %v1311
    %v1315 = vadd.f32 %v1309, %v1311
    %v1316 = vmax.f32 %v1312, 0.0
    %v1317 = vmax.f32 %v1313, 0.0
    %v1318 = vmax.f32 %v1314, 0.0
    %v1319 = vmax.f32 %v1315, 0.0
    %v1320 = vld [vmem:[%s1 + $0x58] sm:$0xf]
    %v1322 = vsel %vm126, %v1316, 0
    %v1325 = vsel %vm126, %v1317, 0
    %v1328 = vsel %vm126, %v1318, 0
    %v1331 = vsel %vm126, %v1319, 0
    %v1334 = vsel %vm135, %v1320, 0
    %1336 = vmatpush.msra.mxu0 0.0
    %1337 = vmatpush.msra.mxu0 0.0
    %1338 = vmatpush.msra.mxu0 0.0
    %1339 = vmatpush.msra.mxu0 0.0
    %1340 = vmatpush.msra.mxu0 0.0
    %1341 = vmatpush.msra.mxu0 0.0
    %1342 = vmatpush.msra.mxu0 0.0
    %1343 = vmatpush.msra.mxu0 0.0
    %1344 = vmatpush.msra.mxu0 0.0
    %1345 = vmatpush.msra.mxu0 0.0
    %1346 = vmatpush.msra.mxu0 0.0
    %1347 = vmatpush.msra.mxu0 0.0
    %1348 = vmatpush.msra.mxu0 0.0
    %1349 = vmatpush.msra.mxu0 0.0
    %1350 = vmatpush.msra.mxu0 0.0
    %1351 = vmatpush.msra.mxu0 %v1334
    %1352 = vmatmul.f32.gmra.mxu0 %v1322
    %v1353 = vpop.f32.mrf.mxu0
    %v1354 = vadd.f32 0.0, %v1353
    %1355 = vmatmul.f32.gmra.mxu0 %v1325
    %v1356 = vpop.f32.mrf.mxu0
    %v1357 = vadd.f32 0.0, %v1356
    %1358 = vmatmul.f32.gmra.mxu0 %v1328
    %v1359 = vpop.f32.mrf.mxu0
    %v1360 = vadd.f32 0.0, %v1359
    %1361 = vmatmul.f32.gmra.mxu0 %v1331
    %v1362 = vpop.f32.mrf.mxu0
    %v1363 = vadd.f32 0.0, %v1362
    %1364 = vdwg.mxu0
    %v1365 = vadd.f32 %v1185, %v1354
    %v1366 = vadd.f32 %v1186, %v1357
    %v1367 = vadd.f32 %v1187, %v1360
    %v1368 = vadd.f32 %v1188, %v1363
    %v1369 = vsel %vm25, %v1365, 0.0
    %v1370 = vsel %vm25, %v1366, 0.0
    %v1371 = vadd.f32 %v1369, %v1370
    %v1372 = vrot.slane %v1371, 4
    %v1373 = vadd.f32 %v1371, %v1372
    %v1374 = vrot.slane %v1373, 2
    %v1375 = vadd.f32 %v1373, %v1374
    %v1376 = vrot.slane %v1375, 1
    %v1377 = vadd.f32 %v1375, %v1376
    %v1378 = vsel %vm25, %v1367, 0.0
    %v1379 = vsel %vm25, %v1368, 0.0
    %v1380 = vadd.f32 %v1378, %v1379
    %v1381 = vrot.slane %v1380, 4
    %v1382 = vadd.f32 %v1380, %v1381
    %v1383 = vrot.slane %v1382, 2
    %v1384 = vadd.f32 %v1382, %v1383
    %v1385 = vrot.slane %v1384, 1
    %v1386 = vadd.f32 %v1384, %v1385
    %v1387 = vrcp.pop 16.0
    %v1388 = vmul.f32 16.0, %v1387
    %v1389 = vsub.f32 1.0, %v1388
    %v1390 = vmul.f32 %v1387, %v1389
    %v1391 = vadd.f32 %v1387, %v1390
    %vm1392 = vweird.f32 %v1387
    %v1393 = vsel %vm1392, %v1387, %v1391
    %v1394 = vmul.f32 %v1377, %v1393
    %v1395 = vmul.f32 %v1386, %v1393
    %v1396 = vld [vmem:[%s1 + $0x5c] sm:$0xff]
    %v1397 = vld [vmem:[%s1 + $0x64] sm:$0xff]
    %v1398 = vld [vmem:[%s1 + $0x6c] sm:$0xff]
    %v1399 = vld [vmem:[%s1 + $0x74] sm:$0xff]
    %vm1402 = vcmask 1041409
    %v1403 = vsel %vm1402, %v1395, %v1394
    %v1404 = vsel %vm25, %v1403, 0
    %1406 = vmatpush.msra.mxu0 0.0
    %1407 = vmatpush.msra.mxu0 0.0
    %1408 = vmatpush.msra.mxu0 0.0
    %1409 = vmatpush.msra.mxu0 0.0
    %1410 = vmatpush.msra.mxu0 0.0
    %1411 = vmatpush.msra.mxu0 0.0
    %1412 = vmatpush.msra.mxu0 0.0
    %1413 = vmatpush.msra.mxu0 0.0
    %1414 = vmatpush.msra.mxu0 0.0
    %1415 = vmatpush.msra.mxu0 0.0
    %1416 = vmatpush.msra.mxu0 0.0
    %1417 = vmatpush.msra.mxu0 0.0
    %1418 = vmatpush.msra.mxu0 %v1399
    %1419 = vmatpush.msra.mxu0 %v1398
    %1420 = vmatpush.msra.mxu0 %v1397
    %1421 = vmatpush.msra.mxu0 %v1396
    %1422 = vmatmul.f32.gmra.mxu0 %v1404
    %v1423 = vpop.f32.mrf.mxu0
    %v1424 = vadd.f32 0.0, %v1423
    %1425 = vdwg.mxu0
    %v1426 = vmax.f32 %v1424, 0.0
    %v1427 = vld [vmem:[%s1 + $0x7c] sm:$0xff]
    %v1428 = vld [vmem:[%s1 + $0x84] sm:$0xff]
    %v1429 = vld [vmem:[%s1 + $0x8c] sm:$0xff]
    %v1430 = vld [vmem:[%s1 + $0x94] sm:$0xff]
    %v1432 = vsel %vm25, %v1426, 0
    %1434 = vmatpush.msra.mxu0 0.0
    %1435 = vmatpush.msra.mxu0 0.0
    %1436 = vmatpush.msra.mxu0 0.0
    %1437 = vmatpush.msra.mxu0 0.0
    %1438 = vmatpush.msra.mxu0 0.0
    %1439 = vmatpush.msra.mxu0 0.0
    %1440 = vmatpush.msra.mxu0 0.0
    %1441 = vmatpush.msra.mxu0 0.0
    %1442 = vmatpush.msra.mxu0 0.0
    %1443 = vmatpush.msra.mxu0 0.0
    %1444 = vmatpush.msra.mxu0 0.0
    %1445 = vmatpush.msra.mxu0 0.0
    %1446 = vmatpush.msra.mxu0 %v1430
    %1447 = vmatpush.msra.mxu0 %v1429
    %1448 = vmatpush.msra.mxu0 %v1428
    %1449 = vmatpush.msra.mxu0 %v1427
    %1450 = vmatmul.f32.gmra.mxu0 %v1432
    %v1451 = vpop.f32.mrf.mxu0
    %v1452 = vadd.f32 0.0, %v1451
    %1453 = vdwg.mxu0
    %v1454 = vxor.u32 %v1452, 2147483648
    %v1455 = vmul.f32 %v1454, 1.442695
    %v1456 = vpow.pop %v1455
    %v1457 = vadd.f32 %v1456, 1.0
    %v1458 = vrcp.pop %v1457
    %v1459 = vmul.f32 %v1457, %v1458
    %v1460 = vsub.f32 1.0, %v1459
    %v1461 = vmul.f32 %v1458, %v1460
    %v1462 = vadd.f32 %v1458, %v1461
    %vm1463 = vweird.f32 %v1457
    %vm1464 = vweird.f32 %v1458
    %vm1465 = vmor %vm1463, %vm1464
    %v1466 = vsel %vm1465, %v1458, %v1462
    %v1467 = vand.u32 2147483647, %v1457
    %vm1468 = vcmp.eq.f32.partialorder %v1467, 8.507059e+37
    %v1469 = vand.u32 %v1457, 2147483648
    %v1470 = vor.u32 1.1754944e-38, %v1469
    %v1471 = vsel %vm1468, %v1470, %v1466
    %v1472 = vmul.f32 1.0, %v1471
    %v1474 = vrot.slane %v1472, 1
    %v1475 = vperm.slane %v1472, 0
    %v1476 = vperm.slane %v1474, 0
    %v1479 = vmul.f32 %v1365, %v1475
    %v1480 = vmul.f32 %v1366, %v1475
    %v1481 = vmul.f32 %v1367, %v1476
    %v1482 = vmul.f32 %v1368, %v1476
    %v1483 = vadd.f32 %v1479, %v15
    %v1484 = vadd.f32 %v1480, %v16
    %v1485 = vadd.f32 %v1481, %v17
    %v1486 = vadd.f32 %v1482, %v18
    %v1487 = vmax.f32 %v1483, 0.0
    %v1488 = vmax.f32 %v1484, 0.0
    %v1489 = vmax.f32 %v1485, 0.0
    %v1490 = vmax.f32 %v1486, 0.0
    %1491 = vst.msk [vmem:[#allocation2] sm:$0xff] %vm25, %v1487
    %1492 = vst.msk [vmem:[#allocation2 + $0x8] sm:$0xff] %vm25, %v1488
    %1493 = vst.msk [vmem:[#allocation2 + $0x10] sm:$0xff] %vm25, %v1489
    %1494 = vst.msk [vmem:[#allocation2 + $0x18] sm:$0xff] %vm25, %v1490
    // Predicated region
    $region14: #{tpu_custom_call.1} parent=1 // pred_check
      _
    $region15: #{tpu_custom_call.1} parent=1 // pred_check_branch
      %1496 = sbr.rel (0) target = $region17
    $region16: #{tpu_custom_call.1} parent=1 // pred_region
      %1498 = vsyncadd [#allocation3], 0
      %s1499 = sshll.u32 [#allocation2], 4
      %s1500 = int_to_ptr.vmem [resolvable:$true] %s1499
      %s1501 = sshll.u32 %s3, 4
      %s1502 = int_to_ptr.hbm [resolvable:$true] %s1501
      %1507 = dma.vmem_to_hbm [thread:$0]  %s1500, 512, %s1502, [#allocation3], 128, 128, 8
    $region17: #{tpu_custom_call.1} parent=1 // pred_fallthru
      _
    // Predicated region
    $region18: #{tpu_custom_call.1} parent=1 // pred_check
      _
    $region19: #{tpu_custom_call.1} parent=1 // pred_check_branch
      %1509 = sbr.rel (0) target = $region21
    $region20: #{tpu_custom_call.1} parent=1 // pred_region
      %1511 = dma.done [#allocation3], 512
    $region21: #{tpu_custom_call.1} parent=1 // pred_fallthru
      _
    %1512 = vsyncpa [#allocation3], 1

</llo_original>
